<compile_context>
chip_gen: v6e
topology: v6e:2x2x1
jax: 0.10.0
libtpu: 0.0.40
codegen_flags: <defaults>
</compile_context>

<pallas_src>
import numpy as np

import jax
import jax.numpy as jnp
from jax import lax
from jax.experimental import pallas as pl
from jax.experimental.pallas import tpu as pltpu


# --------------------------------------------------------------------------
# Static network dimensions (MNIST_Net).
# --------------------------------------------------------------------------
KH = KW = 5
C1_OUT = 10
C2_OUT = 20
H2O = 8                    # conv2 output rows (12 - 5 + 1)
H2P = W2P = 4              # conv2 output after 2x2 pool
FC1_OUT = 50
FC2_OUT = 10

IN_ROWS = 40               # 28 image rows zero-padded to 40 (8-aligned, >= 36)
C1_ROWS = 32               # conv1 output rows computed (24 valid + 8 junk)
P1_ROWS = 16               # conv1 pooled rows kept (12 valid + 4 junk)
OUT_W = 64                 # packed output slab: [0:50]=e1, [50:60]=logits

# Images per grid step.  64 works on v5e/v6e (128 MiB VMEM) and v7x (64 MiB);
# large batches give >=2 grid steps so v7x's two TensorCores both get work.
_BATCH_TILE = 64


# --------------------------------------------------------------------------
# Fused kernel: conv1 + pool + relu + conv2 + pool + relu + fc1 + relu + fc2.
# One grid step processes a tile of `tb` images.
#
# Lane layouts (parity p = wo % 2 split across lane halves so 2x2 w-pooling
# is a max of the two aligned 128-lane halves):
#   conv1 pre-pool : lane = p*128 + (wo//2)*10 + c      (wo in [0,24))
#   conv1 pooled   : lane = wp*10 + c                   (wp in [0,12))
#   conv2 pre-pool : lane = p*128 + (wo//2)*20 + c      (wo in [0,8))
#   conv2 pooled   : lane = wq*20 + c                   (wq in [0,4))
# Junk rows (from the 40/32/16 row padding) never reach a kept output.
# --------------------------------------------------------------------------
def _mnist_fused_kernel(x_ref, w1_ref, b1_ref, w2_ref, b2_ref,
                        fw1_ref, fb1_ref, fw2_ref, fb2_ref, out_ref):
    tb = x_ref.shape[0] // IN_ROWS
    x = x_ref[...]                                        # (tb*40, 28) bf16

    # ---- conv1: 5 banded (Toeplitz) matmuls, shifted-row accumulation -----
    acc1 = None
    for kh in range(KH):
        c = jnp.dot(x, w1_ref[kh], preferred_element_type=jnp.float32)
        c = c.reshape(tb, IN_ROWS, 256)[:, kh:kh + C1_ROWS, :]
        acc1 = c if acc1 is None else acc1 + c            # (tb, 32, 256)

    # 2x2 max pool: w-pool = max of parity lane halves, h-pool = row pairs.
    m = jnp.maximum(acc1[:, :, :128], acc1[:, :, 128:])   # (tb, 32, 128)
    m = jnp.max(m.reshape(tb, P1_ROWS, 2, 128), axis=2)   # (tb, 16, 128)
    m = m.reshape(tb * P1_ROWS, 128)
    # bias then ReLU (bias is pool-invariant, so post-pool is equivalent).
    y1 = jnp.maximum(m + b1_ref[...], 0.0).astype(jnp.bfloat16)

    # ---- conv2: 5 banded matmuls on the lane-dense pooled activation ------
    # (conv2_drop / Dropout2d is identity in eval mode.)
    acc2 = None
    for kh in range(KH):
        c = jnp.dot(y1, w2_ref[kh], preferred_element_type=jnp.float32)
        c = c.reshape(tb, P1_ROWS, 256)[:, kh:kh + H2O, :]
        acc2 = c if acc2 is None else acc2 + c            # (tb, 8, 256)
    a2 = jnp.maximum(acc2[:, :, :128], acc2[:, :, 128:])  # (tb, 8, 128)

    # ---- conv2 h-pool + bias + ReLU fused with fc1 (4-term accumulation) --
    # PyTorch's x.view(-1, 320) C,H,W order is absorbed into fw1's row layout.
    e1 = None
    for h in range(H2P):
        r = jnp.maximum(a2[:, 2 * h, :], a2[:, 2 * h + 1, :])   # (tb, 128)
        r = jnp.maximum(r + b2_ref[...], 0.0).astype(jnp.bfloat16)
        d = jnp.dot(r, fw1_ref[h], preferred_element_type=jnp.float32)
        e1 = d if e1 is None else e1 + d
    e1 = jnp.maximum(e1 + fb1_ref[...], 0.0)              # (tb, 50) f32

    # ---- fc2 (dropout between fc1/fc2 is identity in eval mode) ------------
    logits = jnp.dot(e1.astype(jnp.bfloat16), fw2_ref[...],
                     preferred_element_type=jnp.float32) + fb2_ref[...]

    # ---- single packed output slab -----------------------------------------
    out_ref[:, 0:FC1_OUT] = e1
    out_ref[:, FC1_OUT:FC1_OUT + FC2_OUT] = logits


# --------------------------------------------------------------------------
# Wrapper.
# --------------------------------------------------------------------------
def _forward(kparams, x_nchw, batch_tile):
    B = x_nchw.shape[0]
    tb = min(batch_tile, B)
    n_tiles = -(-B // tb)
    Bp = n_tiles * tb

    # Raw images -> (Bp*40, 28) bf16 row stream (layout plumbing only).
    x = x_nchw.reshape(B, 28, 28).astype(jnp.bfloat16)
    x = jnp.pad(x, ((0, Bp - B), (0, IN_ROWS - 28), (0, 0)))
    x = x.reshape(Bp * IN_ROWS, 28)

    out = pl.pallas_call(
        _mnist_fused_kernel,
        out_shape=jax.ShapeDtypeStruct((Bp, OUT_W), jnp.float32),
        grid=(n_tiles,),
        in_specs=[
            pl.BlockSpec((tb * IN_ROWS, 28), lambda i: (i, 0)),      # images
            pl.BlockSpec((KH, 28, 256), lambda i: (0, 0, 0)),        # W1 band
            pl.BlockSpec((1, 128), lambda i: (0, 0)),                # b1 tiled
            pl.BlockSpec((KH, 128, 256), lambda i: (0, 0, 0)),       # W2 band
            pl.BlockSpec((1, 128), lambda i: (0, 0)),                # b2 tiled
            pl.BlockSpec((H2P, 128, FC1_OUT), lambda i: (0, 0, 0)),  # fc1 W
            pl.BlockSpec((1, FC1_OUT), lambda i: (0, 0)),            # fc1 b
            pl.BlockSpec((FC1_OUT, FC2_OUT), lambda i: (0, 0)),      # fc2 W
            pl.BlockSpec((1, FC2_OUT), lambda i: (0, 0)),            # fc2 b
        ],
        out_specs=pl.BlockSpec((tb, OUT_W), lambda i: (i, 0)),
        compiler_params=pltpu.CompilerParams(
            dimension_semantics=("parallel",),
            vmem_limit_bytes=48 * 1024 * 1024),
    )(x, kparams["w1"], kparams["b1"], kparams["w2"], kparams["b2"],
      kparams["fw1"], kparams["fb1"], kparams["fw2"], kparams["fb2"])

    e1 = out[:B, :FC1_OUT]
    logits = out[:B, FC1_OUT:FC1_OUT + FC2_OUT]
    return logits, e1


@jax.jit
def mnist_net_forward(kparams, x_nchw):
    """Returns (logits, e1) exactly like MNIST_Net.forward (eval mode)."""
    return _forward(kparams, x_nchw, _BATCH_TILE)


# --------------------------------------------------------------------------
# Parameter handling: PyTorch-layout tensors -> kernel layouts (host side).
# --------------------------------------------------------------------------
def torch_params_to_kernel(tp):
    c1w = np.asarray(tp["conv1_w"], np.float32)   # (10, 1, 5, 5)
    c1b = np.asarray(tp["conv1_b"], np.float32)   # (10,)
    c2w = np.asarray(tp["conv2_w"], np.float32)   # (20, 10, 5, 5)
    c2b = np.asarray(tp["conv2_b"], np.float32)   # (20,)
    f1w = np.asarray(tp["fc1_w"], np.float32)     # (50, 320)
    f1b = np.asarray(tp["fc1_b"], np.float32)     # (50,)
    f2w = np.asarray(tp["fc2_w"], np.float32)     # (10, 50)
    f2b = np.asarray(tp["fc2_b"], np.float32)     # (10,)

    # conv1 banded Toeplitz: W1[kh, w_in, (wo%2)*128 + (wo//2)*10 + c].
    W1 = np.zeros((KH, 28, 256), np.float32)
    for kh in range(KH):
        for kw in range(KW):
            for wo in range(24):
                base = (wo % 2) * 128 + (wo // 2) * C1_OUT
                W1[kh, wo + kw, base:base + C1_OUT] = c1w[:, 0, kh, kw]
    b1 = np.zeros((1, 128), np.float32)
    for wp in range(12):
        b1[0, wp * C1_OUT:(wp + 1) * C1_OUT] = c1b

    # conv2 banded: rows = pooled-conv1 lanes (w_in*10+cin), cols as conv1.
    W2 = np.zeros((KH, 128, 256), np.float32)
    for kh in range(KH):
        for kw in range(KW):
            for wo in range(8):
                base = (wo % 2) * 128 + (wo // 2) * C2_OUT
                for ci in range(C1_OUT):
                    W2[kh, (wo + kw) * C1_OUT + ci,
                       base:base + C2_OUT] = c2w[:, ci, kh, kw]
    b2 = np.zeros((1, 128), np.float32)
    for wq in range(W2P):
        b2[0, wq * C2_OUT:(wq + 1) * C2_OUT] = c2b

    # fc1: absorb PyTorch's (C,H,W) view(-1, 320) order; one block per h row.
    FW1 = np.zeros((H2P, 128, FC1_OUT), np.float32)
    for h in range(H2P):
        for wq in range(W2P):
            for co in range(C2_OUT):
                FW1[h, wq * C2_OUT + co, :] = \
                    f1w[:, co * (H2P * W2P) + h * W2P + wq]

    return dict(
        w1=jnp.asarray(W1, jnp.bfloat16), b1=jnp.asarray(b1),
        w2=jnp.asarray(W2, jnp.bfloat16), b2=jnp.asarray(b2),
        fw1=jnp.asarray(FW1, jnp.bfloat16),
        fb1=jnp.asarray(f1b.reshape(1, FC1_OUT)),
        fw2=jnp.asarray(f2w.T, jnp.bfloat16),
        fb2=jnp.asarray(f2b.reshape(1, FC2_OUT)),
    )


def init_torch_params(key):
    """Deterministic init with PyTorch Conv2d/Linear-style fan-in bounds."""
    ks = jax.random.split(key, 8)

    def u(k, shape, fan_in):
        bound = 1.0 / np.sqrt(float(fan_in))
        return jax.random.uniform(k, shape, jnp.float32, -bound, bound)

    return dict(
        conv1_w=u(ks[0], (C1_OUT, 1, KH, KW), 25),
        conv1_b=u(ks[1], (C1_OUT,), 25),
        conv2_w=u(ks[2], (C2_OUT, C1_OUT, KH, KW), 250),
        conv2_b=u(ks[3], (C2_OUT,), 250),
        fc1_w=u(ks[4], (FC1_OUT, 320), 320),
        fc1_b=u(ks[5], (FC1_OUT,), 320),
        fc2_w=u(ks[6], (FC2_OUT, FC1_OUT), 50),
        fc2_b=u(ks[7], (FC2_OUT,), 50),
    )


# --------------------------------------------------------------------------
# Pure-JAX f32 reference (for a loose self-check of the weight repacking).
# --------------------------------------------------------------------------
def reference_forward(tp, x):
    dn = ("NCHW", "OIHW", "NCHW")
    B = x.shape[0]
    y = lax.conv_general_dilated(x, tp["conv1_w"], (1, 1), "VALID",
                                 dimension_numbers=dn)
    y = y + tp["conv1_b"].reshape(1, -1, 1, 1)
    y = jnp.max(y.reshape(B, C1_OUT, 12, 2, 12, 2), axis=(3, 5))
    y = jnp.maximum(y, 0.0)
    y = lax.conv_general_dilated(y, tp["conv2_w"], (1, 1), "VALID",
                                 dimension_numbers=dn)
    y = y + tp["conv2_b"].reshape(1, -1, 1, 1)
    y = jnp.max(y.reshape(B, C2_OUT, 4, 2, 4, 2), axis=(3, 5))
    y = jnp.maximum(y, 0.0)
    xf = y.reshape(B, 320)
    e1 = jnp.maximum(xf @ tp["fc1_w"].T + tp["fc1_b"], 0.0)
    logits = e1 @ tp["fc2_w"].T + tp["fc2_b"]
    return logits, e1


if __name__ == "__main__":
    key = jax.random.PRNGKey(0)
    kp, kx = jax.random.split(key)
    tparams = init_torch_params(kp)
    kparams = torch_params_to_kernel(tparams)

    # MNIST-shaped input (28x28 single channel is required by the 320-dim
    # flatten in the module); small batch of 2.
    x = jax.random.normal(kx, (2, 1, 28, 28), jnp.float32)

    logits, e1 = mnist_net_forward(kparams, x)
    jax.block_until_ready((logits, e1))
    assert logits.shape == (2, FC2_OUT) and e1.shape == (2, FC1_OUT)
    assert logits.dtype == jnp.float32 and e1.dtype == jnp.float32

    # Loose numerical check vs the f32 reference (kernel weights are bf16).
    ref_logits, ref_e1 = reference_forward(tparams, x)
    assert jnp.allclose(logits, ref_logits, atol=3e-2, rtol=1e-1)
    assert jnp.allclose(e1, ref_e1, atol=3e-2, rtol=1e-1)

    print("KERNEL_OK")
</pallas_src>

<mosaic_0001>
module attributes {stable_mosaic.version = 11 : i64} {
  func.func @_mnist_fused_kernel(%arg0: i32, %arg1: memref<80x28xbf16, #tpu.memory_space<vmem>>, %arg2: memref<5x28x256xbf16, #tpu.memory_space<vmem>>, %arg3: memref<1x128xf32, #tpu.memory_space<vmem>>, %arg4: memref<5x128x256xbf16, #tpu.memory_space<vmem>>, %arg5: memref<1x128xf32, #tpu.memory_space<vmem>>, %arg6: memref<4x128x50xbf16, #tpu.memory_space<vmem>>, %arg7: memref<1x50xf32, #tpu.memory_space<vmem>>, %arg8: memref<50x10xbf16, #tpu.memory_space<vmem>>, %arg9: memref<1x10xf32, #tpu.memory_space<vmem>>, %arg10: memref<2x64xf32, #tpu.memory_space<vmem>>) attributes {dimension_semantics = [#tpu.dimension_semantics<parallel>], iteration_bounds = array<i64: 1>, scalar_prefetch = 0 : i64, scratch_operands = 0 : i64, tpu.core_type = #tpu.core_type<tc>, window_params = [{transform_indices = @transform_0, window_bounds = array<i64: 80, 28>}, {pipeline_mode = #tpu.pipeline_mode<synchronous>, transform_indices = @transform_1, window_bounds = array<i64: 5, 28, 256>}, {pipeline_mode = #tpu.pipeline_mode<synchronous>, transform_indices = @transform_2, window_bounds = array<i64: 1, 128>}, {pipeline_mode = #tpu.pipeline_mode<synchronous>, transform_indices = @transform_3, window_bounds = array<i64: 5, 128, 256>}, {pipeline_mode = #tpu.pipeline_mode<synchronous>, transform_indices = @transform_4, window_bounds = array<i64: 1, 128>}, {pipeline_mode = #tpu.pipeline_mode<synchronous>, transform_indices = @transform_5, window_bounds = array<i64: 4, 128, 50>}, {pipeline_mode = #tpu.pipeline_mode<synchronous>, transform_indices = @transform_6, window_bounds = array<i64: 1, 50>}, {pipeline_mode = #tpu.pipeline_mode<synchronous>, transform_indices = @transform_7, window_bounds = array<i64: 50, 10>}, {pipeline_mode = #tpu.pipeline_mode<synchronous>, transform_indices = @transform_8, window_bounds = array<i64: 1, 10>}, {transform_indices = @transform_9, window_bounds = array<i64: 2, 64>}]} {
    %c0 = arith.constant 0 : index
    %c0_0 = arith.constant 0 : index
    %0 = vector.load %arg1[%c0, %c0_0] : memref<80x28xbf16, #tpu.memory_space<vmem>>, vector<80x28xbf16>
    %c0_1 = arith.constant 0 : index
    %c0_2 = arith.constant 0 : index
    %c0_3 = arith.constant 0 : index
    %1 = vector.load %arg2[%c0_1, %c0_2, %c0_3] : memref<5x28x256xbf16, #tpu.memory_space<vmem>>, vector<1x28x256xbf16>
    %2 = vector.shape_cast %1 : vector<1x28x256xbf16> to vector<28x256xbf16>
    %cst = arith.constant dense<0.000000e+00> : vector<80x256xf32>
    %3 = tpu.matmul %0, %2, %cst {dimension_numbers = #tpu.dot_dimension_numbers<[1], [0], [0], [1], [0, 0, 1, 1], [], []>} : vector<80x28xbf16>, vector<28x256xbf16>, vector<80x256xf32> -> vector<80x256xf32>
    %4 = vector.shape_cast %3 : vector<80x256xf32> to vector<2x40x256xf32>
    %5 = vector.extract_strided_slice %4 {offsets = [0, 0, 0], sizes = [2, 32, 256], strides = [1, 1, 1]} : vector<2x40x256xf32> to vector<2x32x256xf32>
    %c1 = arith.constant 1 : index
    %c0_4 = arith.constant 0 : index
    %c0_5 = arith.constant 0 : index
    %6 = vector.load %arg2[%c1, %c0_4, %c0_5] : memref<5x28x256xbf16, #tpu.memory_space<vmem>>, vector<1x28x256xbf16>
    %7 = vector.shape_cast %6 : vector<1x28x256xbf16> to vector<28x256xbf16>
    %cst_6 = arith.constant dense<0.000000e+00> : vector<80x256xf32>
    %8 = tpu.matmul %0, %7, %cst_6 {dimension_numbers = #tpu.dot_dimension_numbers<[1], [0], [0], [1], [0, 0, 1, 1], [], []>} : vector<80x28xbf16>, vector<28x256xbf16>, vector<80x256xf32> -> vector<80x256xf32>
    %9 = vector.shape_cast %8 : vector<80x256xf32> to vector<2x40x256xf32>
    %10 = vector.extract_strided_slice %9 {offsets = [0, 1, 0], sizes = [2, 32, 256], strides = [1, 1, 1]} : vector<2x40x256xf32> to vector<2x32x256xf32>
    %11 = arith.addf %5, %10 : vector<2x32x256xf32>
    %c2 = arith.constant 2 : index
    %c0_7 = arith.constant 0 : index
    %c0_8 = arith.constant 0 : index
    %12 = vector.load %arg2[%c2, %c0_7, %c0_8] : memref<5x28x256xbf16, #tpu.memory_space<vmem>>, vector<1x28x256xbf16>
    %13 = vector.shape_cast %12 : vector<1x28x256xbf16> to vector<28x256xbf16>
    %cst_9 = arith.constant dense<0.000000e+00> : vector<80x256xf32>
    %14 = tpu.matmul %0, %13, %cst_9 {dimension_numbers = #tpu.dot_dimension_numbers<[1], [0], [0], [1], [0, 0, 1, 1], [], []>} : vector<80x28xbf16>, vector<28x256xbf16>, vector<80x256xf32> -> vector<80x256xf32>
    %15 = vector.shape_cast %14 : vector<80x256xf32> to vector<2x40x256xf32>
    %16 = vector.extract_strided_slice %15 {offsets = [0, 2, 0], sizes = [2, 32, 256], strides = [1, 1, 1]} : vector<2x40x256xf32> to vector<2x32x256xf32>
    %17 = arith.addf %11, %16 : vector<2x32x256xf32>
    %c3 = arith.constant 3 : index
    %c0_10 = arith.constant 0 : index
    %c0_11 = arith.constant 0 : index
    %18 = vector.load %arg2[%c3, %c0_10, %c0_11] : memref<5x28x256xbf16, #tpu.memory_space<vmem>>, vector<1x28x256xbf16>
    %19 = vector.shape_cast %18 : vector<1x28x256xbf16> to vector<28x256xbf16>
    %cst_12 = arith.constant dense<0.000000e+00> : vector<80x256xf32>
    %20 = tpu.matmul %0, %19, %cst_12 {dimension_numbers = #tpu.dot_dimension_numbers<[1], [0], [0], [1], [0, 0, 1, 1], [], []>} : vector<80x28xbf16>, vector<28x256xbf16>, vector<80x256xf32> -> vector<80x256xf32>
    %21 = vector.shape_cast %20 : vector<80x256xf32> to vector<2x40x256xf32>
    %22 = vector.extract_strided_slice %21 {offsets = [0, 3, 0], sizes = [2, 32, 256], strides = [1, 1, 1]} : vector<2x40x256xf32> to vector<2x32x256xf32>
    %23 = arith.addf %17, %22 : vector<2x32x256xf32>
    %c4 = arith.constant 4 : index
    %c0_13 = arith.constant 0 : index
    %c0_14 = arith.constant 0 : index
    %24 = vector.load %arg2[%c4, %c0_13, %c0_14] : memref<5x28x256xbf16, #tpu.memory_space<vmem>>, vector<1x28x256xbf16>
    %25 = vector.shape_cast %24 : vector<1x28x256xbf16> to vector<28x256xbf16>
    %cst_15 = arith.constant dense<0.000000e+00> : vector<80x256xf32>
    %26 = tpu.matmul %0, %25, %cst_15 {dimension_numbers = #tpu.dot_dimension_numbers<[1], [0], [0], [1], [0, 0, 1, 1], [], []>} : vector<80x28xbf16>, vector<28x256xbf16>, vector<80x256xf32> -> vector<80x256xf32>
    %27 = vector.shape_cast %26 : vector<80x256xf32> to vector<2x40x256xf32>
    %28 = vector.extract_strided_slice %27 {offsets = [0, 4, 0], sizes = [2, 32, 256], strides = [1, 1, 1]} : vector<2x40x256xf32> to vector<2x32x256xf32>
    %29 = arith.addf %23, %28 : vector<2x32x256xf32>
    %30 = vector.extract_strided_slice %29 {offsets = [0, 0, 0], sizes = [2, 32, 128], strides = [1, 1, 1]} : vector<2x32x256xf32> to vector<2x32x128xf32>
    %31 = vector.extract_strided_slice %29 {offsets = [0, 0, 128], sizes = [2, 32, 128], strides = [1, 1, 1]} : vector<2x32x256xf32> to vector<2x32x128xf32>
    %32 = arith.maximumf %30, %31 : vector<2x32x128xf32>
    %33 = vector.shape_cast %32 : vector<2x32x128xf32> to vector<2x16x2x128xf32>
    %cst_16 = arith.constant dense<0xFF800000> : vector<2x16x128xf32>
    %34 = vector.multi_reduction <maximumf>, %33, %cst_16 [2] : vector<2x16x2x128xf32> to vector<2x16x128xf32>
    %35 = vector.shape_cast %34 : vector<2x16x128xf32> to vector<32x128xf32>
    %c0_17 = arith.constant 0 : index
    %c0_18 = arith.constant 0 : index
    %36 = vector.load %arg3[%c0_17, %c0_18] : memref<1x128xf32, #tpu.memory_space<vmem>>, vector<1x128xf32>
    %37 = vector.broadcast %36 : vector<1x128xf32> to vector<32x128xf32>
    %38 = arith.addf %35, %37 : vector<32x128xf32>
    %cst_19 = arith.constant 0.000000e+00 : f32
    %39 = vector.broadcast %cst_19 : f32 to vector<32x128xf32>
    %40 = arith.maximumf %38, %39 : vector<32x128xf32>
    %41 = arith.truncf %40 : vector<32x128xf32> to vector<32x128xbf16>
    %c0_20 = arith.constant 0 : index
    %c0_21 = arith.constant 0 : index
    %c0_22 = arith.constant 0 : index
    %42 = vector.load %arg4[%c0_20, %c0_21, %c0_22] : memref<5x128x256xbf16, #tpu.memory_space<vmem>>, vector<1x128x256xbf16>
    %43 = vector.shape_cast %42 : vector<1x128x256xbf16> to vector<128x256xbf16>
    %cst_23 = arith.constant dense<0.000000e+00> : vector<32x256xf32>
    %44 = tpu.matmul %41, %43, %cst_23 {dimension_numbers = #tpu.dot_dimension_numbers<[1], [0], [0], [1], [0, 0, 1, 1], [], []>} : vector<32x128xbf16>, vector<128x256xbf16>, vector<32x256xf32> -> vector<32x256xf32>
    %45 = vector.shape_cast %44 : vector<32x256xf32> to vector<2x16x256xf32>
    %46 = vector.extract_strided_slice %45 {offsets = [0, 0, 0], sizes = [2, 8, 256], strides = [1, 1, 1]} : vector<2x16x256xf32> to vector<2x8x256xf32>
    %c1_24 = arith.constant 1 : index
    %c0_25 = arith.constant 0 : index
    %c0_26 = arith.constant 0 : index
    %47 = vector.load %arg4[%c1_24, %c0_25, %c0_26] : memref<5x128x256xbf16, #tpu.memory_space<vmem>>, vector<1x128x256xbf16>
    %48 = vector.shape_cast %47 : vector<1x128x256xbf16> to vector<128x256xbf16>
    %cst_27 = arith.constant dense<0.000000e+00> : vector<32x256xf32>
    %49 = tpu.matmul %41, %48, %cst_27 {dimension_numbers = #tpu.dot_dimension_numbers<[1], [0], [0], [1], [0, 0, 1, 1], [], []>} : vector<32x128xbf16>, vector<128x256xbf16>, vector<32x256xf32> -> vector<32x256xf32>
    %50 = vector.shape_cast %49 : vector<32x256xf32> to vector<2x16x256xf32>
    %51 = vector.extract_strided_slice %50 {offsets = [0, 1, 0], sizes = [2, 8, 256], strides = [1, 1, 1]} : vector<2x16x256xf32> to vector<2x8x256xf32>
    %52 = arith.addf %46, %51 : vector<2x8x256xf32>
    %c2_28 = arith.constant 2 : index
    %c0_29 = arith.constant 0 : index
    %c0_30 = arith.constant 0 : index
    %53 = vector.load %arg4[%c2_28, %c0_29, %c0_30] : memref<5x128x256xbf16, #tpu.memory_space<vmem>>, vector<1x128x256xbf16>
    %54 = vector.shape_cast %53 : vector<1x128x256xbf16> to vector<128x256xbf16>
    %cst_31 = arith.constant dense<0.000000e+00> : vector<32x256xf32>
    %55 = tpu.matmul %41, %54, %cst_31 {dimension_numbers = #tpu.dot_dimension_numbers<[1], [0], [0], [1], [0, 0, 1, 1], [], []>} : vector<32x128xbf16>, vector<128x256xbf16>, vector<32x256xf32> -> vector<32x256xf32>
    %56 = vector.shape_cast %55 : vector<32x256xf32> to vector<2x16x256xf32>
    %57 = vector.extract_strided_slice %56 {offsets = [0, 2, 0], sizes = [2, 8, 256], strides = [1, 1, 1]} : vector<2x16x256xf32> to vector<2x8x256xf32>
    %58 = arith.addf %52, %57 : vector<2x8x256xf32>
    %c3_32 = arith.constant 3 : index
    %c0_33 = arith.constant 0 : index
    %c0_34 = arith.constant 0 : index
    %59 = vector.load %arg4[%c3_32, %c0_33, %c0_34] : memref<5x128x256xbf16, #tpu.memory_space<vmem>>, vector<1x128x256xbf16>
    %60 = vector.shape_cast %59 : vector<1x128x256xbf16> to vector<128x256xbf16>
    %cst_35 = arith.constant dense<0.000000e+00> : vector<32x256xf32>
    %61 = tpu.matmul %41, %60, %cst_35 {dimension_numbers = #tpu.dot_dimension_numbers<[1], [0], [0], [1], [0, 0, 1, 1], [], []>} : vector<32x128xbf16>, vector<128x256xbf16>, vector<32x256xf32> -> vector<32x256xf32>
    %62 = vector.shape_cast %61 : vector<32x256xf32> to vector<2x16x256xf32>
    %63 = vector.extract_strided_slice %62 {offsets = [0, 3, 0], sizes = [2, 8, 256], strides = [1, 1, 1]} : vector<2x16x256xf32> to vector<2x8x256xf32>
    %64 = arith.addf %58, %63 : vector<2x8x256xf32>
    %c4_36 = arith.constant 4 : index
    %c0_37 = arith.constant 0 : index
    %c0_38 = arith.constant 0 : index
    %65 = vector.load %arg4[%c4_36, %c0_37, %c0_38] : memref<5x128x256xbf16, #tpu.memory_space<vmem>>, vector<1x128x256xbf16>
    %66 = vector.shape_cast %65 : vector<1x128x256xbf16> to vector<128x256xbf16>
    %cst_39 = arith.constant dense<0.000000e+00> : vector<32x256xf32>
    %67 = tpu.matmul %41, %66, %cst_39 {dimension_numbers = #tpu.dot_dimension_numbers<[1], [0], [0], [1], [0, 0, 1, 1], [], []>} : vector<32x128xbf16>, vector<128x256xbf16>, vector<32x256xf32> -> vector<32x256xf32>
    %68 = vector.shape_cast %67 : vector<32x256xf32> to vector<2x16x256xf32>
    %69 = vector.extract_strided_slice %68 {offsets = [0, 4, 0], sizes = [2, 8, 256], strides = [1, 1, 1]} : vector<2x16x256xf32> to vector<2x8x256xf32>
    %70 = arith.addf %64, %69 : vector<2x8x256xf32>
    %71 = vector.extract_strided_slice %70 {offsets = [0, 0, 0], sizes = [2, 8, 128], strides = [1, 1, 1]} : vector<2x8x256xf32> to vector<2x8x128xf32>
    %72 = vector.extract_strided_slice %70 {offsets = [0, 0, 128], sizes = [2, 8, 128], strides = [1, 1, 1]} : vector<2x8x256xf32> to vector<2x8x128xf32>
    %73 = arith.maximumf %71, %72 : vector<2x8x128xf32>
    %74 = vector.extract_strided_slice %73 {offsets = [0, 0, 0], sizes = [2, 1, 128], strides = [1, 1, 1]} : vector<2x8x128xf32> to vector<2x1x128xf32>
    %75 = vector.shape_cast %74 : vector<2x1x128xf32> to vector<2x128xf32>
    %76 = vector.extract_strided_slice %73 {offsets = [0, 1, 0], sizes = [2, 1, 128], strides = [1, 1, 1]} : vector<2x8x128xf32> to vector<2x1x128xf32>
    %77 = vector.shape_cast %76 : vector<2x1x128xf32> to vector<2x128xf32>
    %78 = arith.maximumf %75, %77 : vector<2x128xf32>
    %c0_40 = arith.constant 0 : index
    %c0_41 = arith.constant 0 : index
    %79 = vector.load %arg5[%c0_40, %c0_41] : memref<1x128xf32, #tpu.memory_space<vmem>>, vector<1x128xf32>
    %80 = vector.broadcast %79 : vector<1x128xf32> to vector<2x128xf32>
    %81 = arith.addf %78, %80 : vector<2x128xf32>
    %cst_42 = arith.constant 0.000000e+00 : f32
    %82 = vector.broadcast %cst_42 : f32 to vector<2x128xf32>
    %83 = arith.maximumf %81, %82 : vector<2x128xf32>
    %84 = arith.truncf %83 : vector<2x128xf32> to vector<2x128xbf16>
    %c0_43 = arith.constant 0 : index
    %c0_44 = arith.constant 0 : index
    %c0_45 = arith.constant 0 : index
    %85 = vector.load %arg6[%c0_43, %c0_44, %c0_45] : memref<4x128x50xbf16, #tpu.memory_space<vmem>>, vector<1x128x50xbf16>
    %86 = vector.shape_cast %85 : vector<1x128x50xbf16> to vector<128x50xbf16>
    %cst_46 = arith.constant dense<0.000000e+00> : vector<2x50xf32>
    %87 = tpu.matmul %84, %86, %cst_46 {dimension_numbers = #tpu.dot_dimension_numbers<[1], [0], [0], [1], [0, 0, 1, 1], [], []>} : vector<2x128xbf16>, vector<128x50xbf16>, vector<2x50xf32> -> vector<2x50xf32>
    %88 = vector.extract_strided_slice %73 {offsets = [0, 2, 0], sizes = [2, 1, 128], strides = [1, 1, 1]} : vector<2x8x128xf32> to vector<2x1x128xf32>
    %89 = vector.shape_cast %88 : vector<2x1x128xf32> to vector<2x128xf32>
    %90 = vector.extract_strided_slice %73 {offsets = [0, 3, 0], sizes = [2, 1, 128], strides = [1, 1, 1]} : vector<2x8x128xf32> to vector<2x1x128xf32>
    %91 = vector.shape_cast %90 : vector<2x1x128xf32> to vector<2x128xf32>
    %92 = arith.maximumf %89, %91 : vector<2x128xf32>
    %c0_47 = arith.constant 0 : index
    %c0_48 = arith.constant 0 : index
    %93 = vector.load %arg5[%c0_47, %c0_48] : memref<1x128xf32, #tpu.memory_space<vmem>>, vector<1x128xf32>
    %94 = vector.broadcast %93 : vector<1x128xf32> to vector<2x128xf32>
    %95 = arith.addf %92, %94 : vector<2x128xf32>
    %cst_49 = arith.constant 0.000000e+00 : f32
    %96 = vector.broadcast %cst_49 : f32 to vector<2x128xf32>
    %97 = arith.maximumf %95, %96 : vector<2x128xf32>
    %98 = arith.truncf %97 : vector<2x128xf32> to vector<2x128xbf16>
    %c1_50 = arith.constant 1 : index
    %c0_51 = arith.constant 0 : index
    %c0_52 = arith.constant 0 : index
    %99 = vector.load %arg6[%c1_50, %c0_51, %c0_52] : memref<4x128x50xbf16, #tpu.memory_space<vmem>>, vector<1x128x50xbf16>
    %100 = vector.shape_cast %99 : vector<1x128x50xbf16> to vector<128x50xbf16>
    %cst_53 = arith.constant dense<0.000000e+00> : vector<2x50xf32>
    %101 = tpu.matmul %98, %100, %cst_53 {dimension_numbers = #tpu.dot_dimension_numbers<[1], [0], [0], [1], [0, 0, 1, 1], [], []>} : vector<2x128xbf16>, vector<128x50xbf16>, vector<2x50xf32> -> vector<2x50xf32>
    %102 = arith.addf %87, %101 : vector<2x50xf32>
    %103 = vector.extract_strided_slice %73 {offsets = [0, 4, 0], sizes = [2, 1, 128], strides = [1, 1, 1]} : vector<2x8x128xf32> to vector<2x1x128xf32>
    %104 = vector.shape_cast %103 : vector<2x1x128xf32> to vector<2x128xf32>
    %105 = vector.extract_strided_slice %73 {offsets = [0, 5, 0], sizes = [2, 1, 128], strides = [1, 1, 1]} : vector<2x8x128xf32> to vector<2x1x128xf32>
    %106 = vector.shape_cast %105 : vector<2x1x128xf32> to vector<2x128xf32>
    %107 = arith.maximumf %104, %106 : vector<2x128xf32>
    %c0_54 = arith.constant 0 : index
    %c0_55 = arith.constant 0 : index
    %108 = vector.load %arg5[%c0_54, %c0_55] : memref<1x128xf32, #tpu.memory_space<vmem>>, vector<1x128xf32>
    %109 = vector.broadcast %108 : vector<1x128xf32> to vector<2x128xf32>
    %110 = arith.addf %107, %109 : vector<2x128xf32>
    %cst_56 = arith.constant 0.000000e+00 : f32
    %111 = vector.broadcast %cst_56 : f32 to vector<2x128xf32>
    %112 = arith.maximumf %110, %111 : vector<2x128xf32>
    %113 = arith.truncf %112 : vector<2x128xf32> to vector<2x128xbf16>
    %c2_57 = arith.constant 2 : index
    %c0_58 = arith.constant 0 : index
    %c0_59 = arith.constant 0 : index
    %114 = vector.load %arg6[%c2_57, %c0_58, %c0_59] : memref<4x128x50xbf16, #tpu.memory_space<vmem>>, vector<1x128x50xbf16>
    %115 = vector.shape_cast %114 : vector<1x128x50xbf16> to vector<128x50xbf16>
    %cst_60 = arith.constant dense<0.000000e+00> : vector<2x50xf32>
    %116 = tpu.matmul %113, %115, %cst_60 {dimension_numbers = #tpu.dot_dimension_numbers<[1], [0], [0], [1], [0, 0, 1, 1], [], []>} : vector<2x128xbf16>, vector<128x50xbf16>, vector<2x50xf32> -> vector<2x50xf32>
    %117 = arith.addf %102, %116 : vector<2x50xf32>
    %118 = vector.extract_strided_slice %73 {offsets = [0, 6, 0], sizes = [2, 1, 128], strides = [1, 1, 1]} : vector<2x8x128xf32> to vector<2x1x128xf32>
    %119 = vector.shape_cast %118 : vector<2x1x128xf32> to vector<2x128xf32>
    %120 = vector.extract_strided_slice %73 {offsets = [0, 7, 0], sizes = [2, 1, 128], strides = [1, 1, 1]} : vector<2x8x128xf32> to vector<2x1x128xf32>
    %121 = vector.shape_cast %120 : vector<2x1x128xf32> to vector<2x128xf32>
    %122 = arith.maximumf %119, %121 : vector<2x128xf32>
    %c0_61 = arith.constant 0 : index
    %c0_62 = arith.constant 0 : index
    %123 = vector.load %arg5[%c0_61, %c0_62] : memref<1x128xf32, #tpu.memory_space<vmem>>, vector<1x128xf32>
    %124 = vector.broadcast %123 : vector<1x128xf32> to vector<2x128xf32>
    %125 = arith.addf %122, %124 : vector<2x128xf32>
    %cst_63 = arith.constant 0.000000e+00 : f32
    %126 = vector.broadcast %cst_63 : f32 to vector<2x128xf32>
    %127 = arith.maximumf %125, %126 : vector<2x128xf32>
    %128 = arith.truncf %127 : vector<2x128xf32> to vector<2x128xbf16>
    %c3_64 = arith.constant 3 : index
    %c0_65 = arith.constant 0 : index
    %c0_66 = arith.constant 0 : index
    %129 = vector.load %arg6[%c3_64, %c0_65, %c0_66] : memref<4x128x50xbf16, #tpu.memory_space<vmem>>, vector<1x128x50xbf16>
    %130 = vector.shape_cast %129 : vector<1x128x50xbf16> to vector<128x50xbf16>
    %cst_67 = arith.constant dense<0.000000e+00> : vector<2x50xf32>
    %131 = tpu.matmul %128, %130, %cst_67 {dimension_numbers = #tpu.dot_dimension_numbers<[1], [0], [0], [1], [0, 0, 1, 1], [], []>} : vector<2x128xbf16>, vector<128x50xbf16>, vector<2x50xf32> -> vector<2x50xf32>
    %132 = arith.addf %117, %131 : vector<2x50xf32>
    %c0_68 = arith.constant 0 : index
    %c0_69 = arith.constant 0 : index
    %133 = vector.load %arg7[%c0_68, %c0_69] : memref<1x50xf32, #tpu.memory_space<vmem>>, vector<1x50xf32>
    %134 = vector.broadcast %133 : vector<1x50xf32> to vector<2x50xf32>
    %135 = arith.addf %132, %134 : vector<2x50xf32>
    %cst_70 = arith.constant 0.000000e+00 : f32
    %136 = vector.broadcast %cst_70 : f32 to vector<2x50xf32>
    %137 = arith.maximumf %135, %136 : vector<2x50xf32>
    %138 = arith.truncf %137 : vector<2x50xf32> to vector<2x50xbf16>
    %c0_71 = arith.constant 0 : index
    %c0_72 = arith.constant 0 : index
    %139 = vector.load %arg8[%c0_71, %c0_72] : memref<50x10xbf16, #tpu.memory_space<vmem>>, vector<50x10xbf16>
    %cst_73 = arith.constant dense<0.000000e+00> : vector<2x10xf32>
    %140 = tpu.matmul %138, %139, %cst_73 {dimension_numbers = #tpu.dot_dimension_numbers<[1], [0], [0], [1], [0, 0, 1, 1], [], []>} : vector<2x50xbf16>, vector<50x10xbf16>, vector<2x10xf32> -> vector<2x10xf32>
    %c0_74 = arith.constant 0 : index
    %c0_75 = arith.constant 0 : index
    %141 = vector.load %arg9[%c0_74, %c0_75] : memref<1x10xf32, #tpu.memory_space<vmem>>, vector<1x10xf32>
    %142 = vector.broadcast %141 : vector<1x10xf32> to vector<2x10xf32>
    %143 = arith.addf %140, %142 : vector<2x10xf32>
    %c0_76 = arith.constant 0 : index
    %c0_77 = arith.constant 0 : index
    %144 = vector.load %arg10[%c0_76, %c0_77] : memref<2x64xf32, #tpu.memory_space<vmem>>, vector<2x50xf32>
    tpu.vector_store %arg10[%c0_76, %c0_77], %137 {strides = array<i32>} : memref<2x64xf32, #tpu.memory_space<vmem>>, vector<2x50xf32>,
    %c0_78 = arith.constant 0 : index
    %c50 = arith.constant 50 : index
    %145 = vector.load %arg10[%c0_78, %c50] : memref<2x64xf32, #tpu.memory_space<vmem>>, vector<2x10xf32>
    tpu.vector_store %arg10[%c0_78, %c50], %143 {strides = array<i32>} : memref<2x64xf32, #tpu.memory_space<vmem>>, vector<2x10xf32>,
    return
  }
  func.func @transform_0(%arg0: i32) -> (i32, i32) {
    %c0_i32 = arith.constant 0 : i32
    %c0_i32_0 = arith.constant 0 : i32
    return %arg0, %c0_i32 : i32, i32
  }
  func.func @transform_1(%arg0: i32) -> (i32, i32, i32) {
    %c0_i32 = arith.constant 0 : i32
    %c0_i32_0 = arith.constant 0 : i32
    %c0_i32_1 = arith.constant 0 : i32
    %c0_i32_2 = arith.constant 0 : i32
    return %c0_i32, %c0_i32_0, %c0_i32_1 : i32, i32, i32
  }
  func.func @transform_2(%arg0: i32) -> (i32, i32) {
    %c0_i32 = arith.constant 0 : i32
    %c0_i32_0 = arith.constant 0 : i32
    %c0_i32_1 = arith.constant 0 : i32
    return %c0_i32, %c0_i32_0 : i32, i32
  }
  func.func @transform_3(%arg0: i32) -> (i32, i32, i32) {
    %c0_i32 = arith.constant 0 : i32
    %c0_i32_0 = arith.constant 0 : i32
    %c0_i32_1 = arith.constant 0 : i32
    %c0_i32_2 = arith.constant 0 : i32
    return %c0_i32, %c0_i32_0, %c0_i32_1 : i32, i32, i32
  }
  func.func @transform_4(%arg0: i32) -> (i32, i32) {
    %c0_i32 = arith.constant 0 : i32
    %c0_i32_0 = arith.constant 0 : i32
    %c0_i32_1 = arith.constant 0 : i32
    return %c0_i32, %c0_i32_0 : i32, i32
  }
  func.func @transform_5(%arg0: i32) -> (i32, i32, i32) {
    %c0_i32 = arith.constant 0 : i32
    %c0_i32_0 = arith.constant 0 : i32
    %c0_i32_1 = arith.constant 0 : i32
    %c0_i32_2 = arith.constant 0 : i32
    return %c0_i32, %c0_i32_0, %c0_i32_1 : i32, i32, i32
  }
  func.func @transform_6(%arg0: i32) -> (i32, i32) {
    %c0_i32 = arith.constant 0 : i32
    %c0_i32_0 = arith.constant 0 : i32
    %c0_i32_1 = arith.constant 0 : i32
    return %c0_i32, %c0_i32_0 : i32, i32
  }
  func.func @transform_7(%arg0: i32) -> (i32, i32) {
    %c0_i32 = arith.constant 0 : i32
    %c0_i32_0 = arith.constant 0 : i32
    %c0_i32_1 = arith.constant 0 : i32
    return %c0_i32, %c0_i32_0 : i32, i32
  }
  func.func @transform_8(%arg0: i32) -> (i32, i32) {
    %c0_i32 = arith.constant 0 : i32
    %c0_i32_0 = arith.constant 0 : i32
    %c0_i32_1 = arith.constant 0 : i32
    return %c0_i32, %c0_i32_0 : i32, i32
  }
  func.func @transform_9(%arg0: i32) -> (i32, i32) {
    %c0_i32 = arith.constant 0 : i32
    %c0_i32_0 = arith.constant 0 : i32
    return %arg0, %c0_i32 : i32, i32
  }
}

</mosaic_0001>

<llo_original>
// kernel: mnist_net_forward.1
$region0: #{mnist_net_forward.1}
  #allocation0 [shape = 'u32[]', space=smem, size = 0x4, offset = 0x4, fixed_abs, tag = 'smem constant byte address 0x4 - core index']
  #allocation1 [shape = 'u32[144,128]{1,0:T(1,128)}', space=vmem, size = 0x12000, scoped, tag = 'internal scratch']
  %s0 = inlined_call_operand.vmem [shape: bf16[80,28], index: 0, kind: input, shape index: {}]
  %s1 = inlined_call_operand.hbm [shape: bf16[5,28,256], index: 1, kind: input, shape index: {}]
  %s2 = inlined_call_operand.vmem [shape: f32[1,128], index: 2, kind: input, shape index: {}]
  %s3 = inlined_call_operand.vmem [shape: bf16[5,128,256], index: 3, kind: input, shape index: {}]
  %s4 = inlined_call_operand.vmem [shape: f32[1,128], index: 4, kind: input, shape index: {}]
  %s5 = inlined_call_operand.vmem [shape: bf16[4,128,50], index: 5, kind: input, shape index: {}]
  %s6 = inlined_call_operand.vmem [shape: f32[1,50], index: 6, kind: input, shape index: {}]
  %s7 = inlined_call_operand.vmem [shape: bf16[50,10], index: 7, kind: input, shape index: {}]
  %s8 = inlined_call_operand.vmem [shape: f32[1,10], index: 8, kind: input, shape index: {}]
  %s9 = inlined_call_operand.vmem [shape: f32[2,64], index: 9, kind: output, shape index: {}]
  %s10 = sld [smem:[#allocation0]]
  $region50: #{mnist_net_forward.1} parent=0
    _
  %s12 = ssub.s32 1, %s10
  %s13 = scalar_select 0, %s12, %s10
  $region1: #{mnist_net_forward.1} parent=0
    #allocation2 [shape = 'u8[81920]{0}', space=vmem, size = 0x14000, scoped, tag = 'input window, operand 1, single buffered']
    #allocation3 [shape = 's32[1]{0}', space=sflag, size = 0x4, scoped, tag = 'scoped memory for mnist_net_forward.1']
    %14 = vsyncpa [#allocation3], 0
    // Predicated region
    $region2: #{mnist_net_forward.1} parent=1 // pred_check
      _
    $region3: #{mnist_net_forward.1} parent=1 // pred_check_branch
      %16 = sbr.rel (0) target = $region5
    $region4: #{mnist_net_forward.1} parent=1 // pred_region
      _
    $region5: #{mnist_net_forward.1} parent=1 // pred_fallthru
      _
    // Predicated region
    $region6: #{mnist_net_forward.1} parent=1 // pred_check
      _
    $region7: #{mnist_net_forward.1} parent=1 // pred_check_branch
      %18 = sbr.rel (0) target = $region9
    $region8: #{mnist_net_forward.1} parent=1 // pred_region
      %s20 = ssub.s32 2560, 2560
      %21 = vsyncadd [#allocation3], %s20
      %s22 = sshll.u32 [#allocation2], 4
      %s23 = int_to_ptr.vmem [resolvable:$true] %s22
      %28 = dma.hbm_to_vmem [thread:$0]  %s1, 2560, %s23, [#allocation3], 128, 128, 8
    $region9: #{mnist_net_forward.1} parent=1 // pred_fallthru
      _
    // Predicated region
    $region10: #{mnist_net_forward.1} parent=1 // pred_check
      _
    $region11: #{mnist_net_forward.1} parent=1 // pred_check_branch
      %30 = sbr.rel (0) target = $region13
    $region12: #{mnist_net_forward.1} parent=1 // pred_region
      _
    $region13: #{mnist_net_forward.1} parent=1 // pred_fallthru
      _
    // Predicated region
    $region14: #{mnist_net_forward.1} parent=1 // pred_check
      _
    $region15: #{mnist_net_forward.1} parent=1 // pred_check_branch
      %32 = sbr.rel (0) target = $region17
    $region16: #{mnist_net_forward.1} parent=1 // pred_region
      _
    $region17: #{mnist_net_forward.1} parent=1 // pred_fallthru
      _
    // Predicated region
    $region18: #{mnist_net_forward.1} parent=1 // pred_check
      _
    $region19: #{mnist_net_forward.1} parent=1 // pred_check_branch
      %34 = sbr.rel (0) target = $region21
    $region20: #{mnist_net_forward.1} parent=1 // pred_region
      _
    $region21: #{mnist_net_forward.1} parent=1 // pred_fallthru
      _
    // Predicated region
    $region22: #{mnist_net_forward.1} parent=1 // pred_check
      _
    $region23: #{mnist_net_forward.1} parent=1 // pred_check_branch
      %36 = sbr.rel (0) target = $region25
    $region24: #{mnist_net_forward.1} parent=1 // pred_region
      _
    $region25: #{mnist_net_forward.1} parent=1 // pred_fallthru
      _
    // Predicated region
    $region26: #{mnist_net_forward.1} parent=1 // pred_check
      _
    $region27: #{mnist_net_forward.1} parent=1 // pred_check_branch
      %38 = sbr.rel (0) target = $region29
    $region28: #{mnist_net_forward.1} parent=1 // pred_region
      _
    $region29: #{mnist_net_forward.1} parent=1 // pred_fallthru
      _
    // Predicated region
    $region30: #{mnist_net_forward.1} parent=1 // pred_check
      _
    $region31: #{mnist_net_forward.1} parent=1 // pred_check_branch
      %40 = sbr.rel (0) target = $region33
    $region32: #{mnist_net_forward.1} parent=1 // pred_region
      _
    $region33: #{mnist_net_forward.1} parent=1 // pred_fallthru
      _
    // Predicated region
    $region34: #{mnist_net_forward.1} parent=1 // pred_check
      _
    $region35: #{mnist_net_forward.1} parent=1 // pred_check_branch
      %42 = sbr.rel (0) target = $region37
    $region36: #{mnist_net_forward.1} parent=1 // pred_region
      _
    $region37: #{mnist_net_forward.1} parent=1 // pred_fallthru
      _
    // Predicated region
    $region38: #{mnist_net_forward.1} parent=1 // pred_check
      _
    $region39: #{mnist_net_forward.1} parent=1 // pred_check_branch
      %44 = sbr.rel (0) target = $region41
    $region40: #{mnist_net_forward.1} parent=1 // pred_region
      %45 = dma.done [#allocation3], 2560
    $region41: #{mnist_net_forward.1} parent=1 // pred_fallthru
      _
    %v47 = vld [vmem:[%s0] sm:$0xf]
    %v48 = vld [vmem:[%s0 + $0x4] sm:$0xf]
    %v49 = vld [vmem:[%s0 + $0x8] sm:$0xf]
    %v50 = vld [vmem:[%s0 + $0xc] sm:$0xf]
    %v51 = vld [vmem:[%s0 + $0x10] sm:$0xf]
    %v52 = vld [vmem:[%s0 + $0x14] sm:$0xf]
    %v53 = vld [vmem:[%s0 + $0x18] sm:$0xf]
    %v54 = vld [vmem:[%s0 + $0x1c] sm:$0xf]
    %v55 = vld [vmem:[%s0 + $0x20] sm:$0xf]
    %v56 = vld [vmem:[%s0 + $0x24] sm:$0xf]
    %v57 = vld [vmem:[#allocation2] sm:$0xff]
    %v58 = vld [vmem:[#allocation2 + $0x8] sm:$0xff]
    %v59 = vld [vmem:[#allocation2 + $0x10] sm:$0xff]
    %v60 = vld [vmem:[#allocation2 + $0x18] sm:$0x33]
    %v71 = vunpack.c.l.b16 %v47
    %v72 = vunpack.c.l.b16 %v48
    %v73 = vunpack.c.l.b16 %v49
    %v74 = vunpack.c.l.b16 %v50
    %v75 = vunpack.c.l.b16 %v51
    %v76 = vunpack.c.l.b16 %v52
    %v77 = vunpack.c.l.b16 %v53
    %v78 = vunpack.c.l.b16 %v54
    %v79 = vunpack.c.l.b16 %v55
    %v80 = vunpack.c.l.b16 %v56
    %v81 = vpack.c.b16 %v72, %v71
    %v82 = vpack.c.b16 %v74, %v73
    %v83 = vpack.c.b16 %v76, %v75
    %v84 = vpack.c.b16 %v78, %v77
    %v85 = vpack.c.b16 %v80, %v79
    %v90 = vunpack.c.l.b16 %v57
    %v91 = vunpack.c.h.b16 %v57
    %v92 = vunpack.c.l.b16 %v58
    %v93 = vunpack.c.h.b16 %v58
    %v94 = vunpack.c.l.b16 %v59
    %v95 = vunpack.c.h.b16 %v59
    %v96 = vunpack.c.l.b16 %v60
    %v97 = vunpack.c.h.b16 %v60
    %v98 = vpack.c.b16 %v92, %v90
    %v99 = vpack.c.b16 %v93, %v91
    %v100 = vpack.c.b16 %v96, %v94
    %v101 = vpack.c.b16 %v97, %v95
    %vm104 = vcmask 228352
    %v106 = vsel %vm104, %v81, 0
    %v109 = vsel %vm104, %v82, 0
    %v112 = vsel %vm104, %v83, 0
    %v115 = vsel %vm104, %v84, 0
    %v118 = vsel %vm104, %v85, 0
    %vm120 = vcmask 1045504
    %v122 = vsel %vm120, %v100, 0
    %v125 = vsel %vm120, %v101, 0
    %127 = vmatprep.subr.bf16.mxu0 0
    %128 = vmatpush1.bf16.msra.mxu0 0
    %129 = vmatprep.subr.bf16.mxu0 0
    %130 = vmatpush1.bf16.msra.mxu0 0
    %131 = vmatprep.subr.bf16.mxu0 0
    %132 = vmatpush1.bf16.msra.mxu0 0
    %133 = vmatprep.subr.bf16.mxu0 0
    %134 = vmatpush1.bf16.msra.mxu0 0
    %135 = vmatprep.subr.bf16.mxu0 0
    %136 = vmatpush1.bf16.msra.mxu0 0
    %137 = vmatprep.subr.bf16.mxu0 0
    %138 = vmatpush1.bf16.msra.mxu0 0
    %139 = vmatprep.subr.bf16.mxu0 %v125
    %140 = vmatpush1.bf16.msra.mxu0 %v122
    %141 = vmatprep.subr.bf16.mxu0 %v99
    %142 = vmatpush1.bf16.msra.mxu0 %v98
    %143 = vmatprep.subr.bf16.mxu0 0
    %144 = vmatpush2.bf16.msra.mxu0 0
    %145 = vmatprep.subr.bf16.mxu0 0
    %146 = vmatpush2.bf16.msra.mxu0 0
    %147 = vmatprep.subr.bf16.mxu0 0
    %148 = vmatpush2.bf16.msra.mxu0 0
    %149 = vmatprep.subr.bf16.mxu0 0
    %150 = vmatpush2.bf16.msra.mxu0 0
    %151 = vmatprep.subr.bf16.mxu0 0
    %152 = vmatpush2.bf16.msra.mxu0 0
    %153 = vmatprep.subr.bf16.mxu0 0
    %154 = vmatpush2.bf16.msra.mxu0 0
    %155 = vmatprep.subr.bf16.mxu0 0
    %156 = vmatpush2.bf16.msra.mxu0 0
    %157 = vmatprep.subr.bf16.mxu0 0
    %158 = vmatpush2.bf16.msra.mxu0 0
    %159 = vmatprep.mubr.bf16.mxu0 0
    %160 = vmatmul.mubr.bf16.gmra.mxu0 %v106
    %v161 = vpop.f32.mrf.mxu0
    %v162 = vadd.f32 0.0, %v161
    %v163 = vpop.f32.mrf.mxu0
    %v164 = vadd.f32 0.0, %v163
    %v165 = vpop.f32.mrf.mxu0
    %v166 = vadd.f32 0.0, %v165
    %v167 = vpop.f32.mrf.mxu0
    %v168 = vadd.f32 0.0, %v167
    %169 = vmatprep.mubr.bf16.mxu0 0
    %170 = vmatmul.mubr.bf16.gmra.mxu0 %v109
    %v171 = vpop.f32.mrf.mxu0
    %v172 = vadd.f32 0.0, %v171
    %v173 = vpop.f32.mrf.mxu0
    %v174 = vadd.f32 0.0, %v173
    %v175 = vpop.f32.mrf.mxu0
    %v176 = vadd.f32 0.0, %v175
    %v177 = vpop.f32.mrf.mxu0
    %v178 = vadd.f32 0.0, %v177
    %179 = vmatprep.mubr.bf16.mxu0 0
    %180 = vmatmul.mubr.bf16.gmra.mxu0 %v112
    %v181 = vpop.f32.mrf.mxu0
    %v182 = vpop.f32.mrf.mxu0
    %v183 = vpop.f32.mrf.mxu0
    %v184 = vadd.f32 0.0, %v183
    %v185 = vpop.f32.mrf.mxu0
    %v186 = vadd.f32 0.0, %v185
    %187 = vmatprep.mubr.bf16.mxu0 0
    %188 = vmatmul.mubr.bf16.gmra.mxu0 %v115
    %v189 = vpop.f32.mrf.mxu0
    %v190 = vadd.f32 0.0, %v189
    %v191 = vpop.f32.mrf.mxu0
    %v192 = vadd.f32 0.0, %v191
    %v193 = vpop.f32.mrf.mxu0
    %v194 = vadd.f32 0.0, %v193
    %v195 = vpop.f32.mrf.mxu0
    %v196 = vadd.f32 0.0, %v195
    %197 = vmatprep.mubr.bf16.mxu0 0
    %198 = vmatmul.mubr.bf16.gmra.mxu0 %v118
    %v199 = vpop.f32.mrf.mxu0
    %v200 = vadd.f32 0.0, %v199
    %v201 = vpop.f32.mrf.mxu0
    %v202 = vadd.f32 0.0, %v201
    %v203 = vpop.f32.mrf.mxu0
    %v204 = vpop.f32.mrf.mxu0
    %205 = vdwg.mxu0
    %s206 = scalar_lea.vmem [#allocation2], 32
    %v207 = vld [vmem:[%s206] sm:$0xff]
    %v208 = vld [vmem:[%s206 + $0x8] sm:$0xff]
    %v209 = vld [vmem:[%s206 + $0x10] sm:$0xff]
    %v210 = vld [vmem:[%s206 + $0x18] sm:$0x33]
    %v215 = vunpack.c.l.b16 %v207
    %v216 = vunpack.c.h.b16 %v207
    %v217 = vunpack.c.l.b16 %v208
    %v218 = vunpack.c.h.b16 %v208
    %v219 = vunpack.c.l.b16 %v209
    %v220 = vunpack.c.h.b16 %v209
    %v221 = vunpack.c.l.b16 %v210
    %v222 = vunpack.c.h.b16 %v210
    %v223 = vpack.c.b16 %v217, %v215
    %v224 = vpack.c.b16 %v218, %v216
    %v225 = vpack.c.b16 %v221, %v219
    %v226 = vpack.c.b16 %v222, %v220
    %v230 = vsel %vm120, %v225, 0
    %v233 = vsel %vm120, %v226, 0
    %235 = vmatprep.subr.bf16.mxu0 0
    %236 = vmatpush1.bf16.msra.mxu0 0
    %237 = vmatprep.subr.bf16.mxu0 0
    %238 = vmatpush1.bf16.msra.mxu0 0
    %239 = vmatprep.subr.bf16.mxu0 0
    %240 = vmatpush1.bf16.msra.mxu0 0
    %241 = vmatprep.subr.bf16.mxu0 0
    %242 = vmatpush1.bf16.msra.mxu0 0
    %243 = vmatprep.subr.bf16.mxu0 0
    %244 = vmatpush1.bf16.msra.mxu0 0
    %245 = vmatprep.subr.bf16.mxu0 0
    %246 = vmatpush1.bf16.msra.mxu0 0
    %247 = vmatprep.subr.bf16.mxu0 %v233
    %248 = vmatpush1.bf16.msra.mxu0 %v230
    %249 = vmatprep.subr.bf16.mxu0 %v224
    %250 = vmatpush1.bf16.msra.mxu0 %v223
    %251 = vmatprep.subr.bf16.mxu0 0
    %252 = vmatpush2.bf16.msra.mxu0 0
    %253 = vmatprep.subr.bf16.mxu0 0
    %254 = vmatpush2.bf16.msra.mxu0 0
    %255 = vmatprep.subr.bf16.mxu0 0
    %256 = vmatpush2.bf16.msra.mxu0 0
    %257 = vmatprep.subr.bf16.mxu0 0
    %258 = vmatpush2.bf16.msra.mxu0 0
    %259 = vmatprep.subr.bf16.mxu0 0
    %260 = vmatpush2.bf16.msra.mxu0 0
    %261 = vmatprep.subr.bf16.mxu0 0
    %262 = vmatpush2.bf16.msra.mxu0 0
    %263 = vmatprep.subr.bf16.mxu0 0
    %264 = vmatpush2.bf16.msra.mxu0 0
    %265 = vmatprep.subr.bf16.mxu0 0
    %266 = vmatpush2.bf16.msra.mxu0 0
    %267 = vmatprep.mubr.bf16.mxu0 0
    %268 = vmatmul.mubr.bf16.gmra.mxu0 %v106
    %v269 = vpop.f32.mrf.mxu0
    %v270 = vadd.f32 0.0, %v269
    %v271 = vpop.f32.mrf.mxu0
    %v272 = vadd.f32 0.0, %v271
    %v273 = vpop.f32.mrf.mxu0
    %v274 = vadd.f32 0.0, %v273
    %v275 = vpop.f32.mrf.mxu0
    %v276 = vadd.f32 0.0, %v275
    %277 = vmatprep.mubr.bf16.mxu0 0
    %278 = vmatmul.mubr.bf16.gmra.mxu0 %v109
    %v279 = vpop.f32.mrf.mxu0
    %v280 = vadd.f32 0.0, %v279
    %v281 = vpop.f32.mrf.mxu0
    %v282 = vadd.f32 0.0, %v281
    %v283 = vpop.f32.mrf.mxu0
    %v284 = vadd.f32 0.0, %v283
    %v285 = vpop.f32.mrf.mxu0
    %v286 = vadd.f32 0.0, %v285
    %287 = vmatprep.mubr.bf16.mxu0 0
    %288 = vmatmul.mubr.bf16.gmra.mxu0 %v112
    %v289 = vpop.f32.mrf.mxu0
    %v290 = vadd.f32 0.0, %v289
    %v291 = vpop.f32.mrf.mxu0
    %v292 = vadd.f32 0.0, %v291
    %v293 = vpop.f32.mrf.mxu0
    %v294 = vadd.f32 0.0, %v293
    %v295 = vpop.f32.mrf.mxu0
    %v296 = vadd.f32 0.0, %v295
    %297 = vmatprep.mubr.bf16.mxu0 0
    %298 = vmatmul.mubr.bf16.gmra.mxu0 %v115
    %v299 = vpop.f32.mrf.mxu0
    %v300 = vadd.f32 0.0, %v299
    %v301 = vpop.f32.mrf.mxu0
    %v302 = vadd.f32 0.0, %v301
    %v303 = vpop.f32.mrf.mxu0
    %v304 = vadd.f32 0.0, %v303
    %v305 = vpop.f32.mrf.mxu0
    %v306 = vadd.f32 0.0, %v305
    %307 = vmatprep.mubr.bf16.mxu0 0
    %308 = vmatmul.mubr.bf16.gmra.mxu0 %v118
    %v309 = vpop.f32.mrf.mxu0
    %v310 = vadd.f32 0.0, %v309
    %v311 = vpop.f32.mrf.mxu0
    %v312 = vadd.f32 0.0, %v311
    %v313 = vpop.f32.mrf.mxu0
    %v314 = vadd.f32 0.0, %v313
    %v315 = vpop.f32.mrf.mxu0
    %v316 = vadd.f32 0.0, %v315
    %317 = vdwg.mxu0
    %vm338 = vcmask 1046528
    %v339 = vrot.slane %v270, 1
    %v340 = vrot.slane %v274, 1
    %v341 = vsel %vm338, %v339, %v340
    %v342 = vrot.slane %v272, 1
    %v343 = vrot.slane %v276, 1
    %v344 = vsel %vm338, %v342, %v343
    %v345 = vrot.slane %v280, 1
    %v346 = vsel %vm338, %v340, %v345
    %v347 = vrot.slane %v282, 1
    %v348 = vsel %vm338, %v343, %v347
    %v349 = vrot.slane %v284, 1
    %v350 = vsel %vm338, %v345, %v349
    %v351 = vrot.slane %v286, 1
    %v352 = vsel %vm338, %v347, %v351
    %v353 = vrot.slane %v290, 1
    %v354 = vsel %vm338, %v349, %v353
    %v355 = vrot.slane %v292, 1
    %v356 = vsel %vm338, %v351, %v355
    %v357 = vrot.slane %v294, 1
    %v358 = vrot.slane %v300, 1
    %v359 = vsel %vm338, %v357, %v358
    %v360 = vrot.slane %v296, 1
    %v361 = vrot.slane %v302, 1
    %v362 = vsel %vm338, %v360, %v361
    %v363 = vrot.slane %v304, 1
    %v364 = vsel %vm338, %v358, %v363
    %v365 = vrot.slane %v306, 1
    %v366 = vsel %vm338, %v361, %v365
    %v367 = vrot.slane %v310, 1
    %v368 = vsel %vm338, %v363, %v367
    %v369 = vrot.slane %v312, 1
    %v370 = vsel %vm338, %v365, %v369
    %v371 = vrot.slane %v314, 1
    %v372 = vsel %vm338, %v367, %v371
    %v373 = vrot.slane %v316, 1
    %v374 = vsel %vm338, %v369, %v373
    %v391 = vadd.f32 %v162, %v341
    %v392 = vadd.f32 %v164, %v344
    %v393 = vadd.f32 %v166, %v346
    %v394 = vadd.f32 %v168, %v348
    %v395 = vadd.f32 %v172, %v350
    %v396 = vadd.f32 %v174, %v352
    %v397 = vadd.f32 %v176, %v354
    %v398 = vadd.f32 %v178, %v356
    %v399 = vadd.f32 %v184, %v359
    %v400 = vadd.f32 %v186, %v362
    %v401 = vadd.f32 %v190, %v364
    %v402 = vadd.f32 %v192, %v366
    %v403 = vadd.f32 %v194, %v368
    %v404 = vadd.f32 %v196, %v370
    %v405 = vadd.f32 %v200, %v372
    %v406 = vadd.f32 %v202, %v374
    %s407 = scalar_lea.vmem [#allocation2], 64
    %v408 = vld [vmem:[%s407] sm:$0xff]
    %v409 = vld [vmem:[%s407 + $0x8] sm:$0xff]
    %v410 = vld [vmem:[%s407 + $0x10] sm:$0xff]
    %v411 = vld [vmem:[%s407 + $0x18] sm:$0x33]
    %v416 = vunpack.c.l.b16 %v408
    %v417 = vunpack.c.h.b16 %v408
    %v418 = vunpack.c.l.b16 %v409
    %v419 = vunpack.c.h.b16 %v409
    %v420 = vunpack.c.l.b16 %v410
    %v421 = vunpack.c.h.b16 %v410
    %v422 = vunpack.c.l.b16 %v411
    %v423 = vunpack.c.h.b16 %v411
    %v424 = vpack.c.b16 %v418, %v416
    %v425 = vpack.c.b16 %v419, %v417
    %v426 = vpack.c.b16 %v422, %v420
    %v427 = vpack.c.b16 %v423, %v421
    %v431 = vsel %vm120, %v426, 0
    %v434 = vsel %vm120, %v427, 0
    %436 = vmatprep.subr.bf16.mxu0 0
    %437 = vmatpush1.bf16.msra.mxu0 0
    %438 = vmatprep.subr.bf16.mxu0 0
    %439 = vmatpush1.bf16.msra.mxu0 0
    %440 = vmatprep.subr.bf16.mxu0 0
    %441 = vmatpush1.bf16.msra.mxu0 0
    %442 = vmatprep.subr.bf16.mxu0 0
    %443 = vmatpush1.bf16.msra.mxu0 0
    %444 = vmatprep.subr.bf16.mxu0 0
    %445 = vmatpush1.bf16.msra.mxu0 0
    %446 = vmatprep.subr.bf16.mxu0 0
    %447 = vmatpush1.bf16.msra.mxu0 0
    %448 = vmatprep.subr.bf16.mxu0 %v434
    %449 = vmatpush1.bf16.msra.mxu0 %v431
    %450 = vmatprep.subr.bf16.mxu0 %v425
    %451 = vmatpush1.bf16.msra.mxu0 %v424
    %452 = vmatprep.subr.bf16.mxu0 0
    %453 = vmatpush2.bf16.msra.mxu0 0
    %454 = vmatprep.subr.bf16.mxu0 0
    %455 = vmatpush2.bf16.msra.mxu0 0
    %456 = vmatprep.subr.bf16.mxu0 0
    %457 = vmatpush2.bf16.msra.mxu0 0
    %458 = vmatprep.subr.bf16.mxu0 0
    %459 = vmatpush2.bf16.msra.mxu0 0
    %460 = vmatprep.subr.bf16.mxu0 0
    %461 = vmatpush2.bf16.msra.mxu0 0
    %462 = vmatprep.subr.bf16.mxu0 0
    %463 = vmatpush2.bf16.msra.mxu0 0
    %464 = vmatprep.subr.bf16.mxu0 0
    %465 = vmatpush2.bf16.msra.mxu0 0
    %466 = vmatprep.subr.bf16.mxu0 0
    %467 = vmatpush2.bf16.msra.mxu0 0
    %468 = vmatprep.mubr.bf16.mxu0 0
    %469 = vmatmul.mubr.bf16.gmra.mxu0 %v106
    %v470 = vpop.f32.mrf.mxu0
    %v471 = vadd.f32 0.0, %v470
    %v472 = vpop.f32.mrf.mxu0
    %v473 = vadd.f32 0.0, %v472
    %v474 = vpop.f32.mrf.mxu0
    %v475 = vadd.f32 0.0, %v474
    %v476 = vpop.f32.mrf.mxu0
    %v477 = vadd.f32 0.0, %v476
    %478 = vmatprep.mubr.bf16.mxu0 0
    %479 = vmatmul.mubr.bf16.gmra.mxu0 %v109
    %v480 = vpop.f32.mrf.mxu0
    %v481 = vadd.f32 0.0, %v480
    %v482 = vpop.f32.mrf.mxu0
    %v483 = vadd.f32 0.0, %v482
    %v484 = vpop.f32.mrf.mxu0
    %v485 = vadd.f32 0.0, %v484
    %v486 = vpop.f32.mrf.mxu0
    %v487 = vadd.f32 0.0, %v486
    %488 = vmatprep.mubr.bf16.mxu0 0
    %489 = vmatmul.mubr.bf16.gmra.mxu0 %v112
    %v490 = vpop.f32.mrf.mxu0
    %v491 = vadd.f32 0.0, %v490
    %v492 = vpop.f32.mrf.mxu0
    %v493 = vadd.f32 0.0, %v492
    %v494 = vpop.f32.mrf.mxu0
    %v495 = vadd.f32 0.0, %v494
    %v496 = vpop.f32.mrf.mxu0
    %v497 = vadd.f32 0.0, %v496
    %498 = vmatprep.mubr.bf16.mxu0 0
    %499 = vmatmul.mubr.bf16.gmra.mxu0 %v115
    %v500 = vpop.f32.mrf.mxu0
    %v501 = vadd.f32 0.0, %v500
    %v502 = vpop.f32.mrf.mxu0
    %v503 = vadd.f32 0.0, %v502
    %v504 = vpop.f32.mrf.mxu0
    %v505 = vadd.f32 0.0, %v504
    %v506 = vpop.f32.mrf.mxu0
    %v507 = vadd.f32 0.0, %v506
    %508 = vmatprep.mubr.bf16.mxu0 0
    %509 = vmatmul.mubr.bf16.gmra.mxu0 %v118
    %v510 = vpop.f32.mrf.mxu0
    %v511 = vadd.f32 0.0, %v510
    %v512 = vpop.f32.mrf.mxu0
    %v513 = vadd.f32 0.0, %v512
    %v514 = vpop.f32.mrf.mxu0
    %v515 = vadd.f32 0.0, %v514
    %v516 = vpop.f32.mrf.mxu0
    %v517 = vadd.f32 0.0, %v516
    %518 = vdwg.mxu0
    %v539 = vrot.slane %v471, 2
    %v540 = vrot.slane %v475, 2
    %v541 = vsel %vm120, %v539, %v540
    %v542 = vrot.slane %v473, 2
    %v543 = vrot.slane %v477, 2
    %v544 = vsel %vm120, %v542, %v543
    %v545 = vrot.slane %v481, 2
    %v546 = vsel %vm120, %v540, %v545
    %v547 = vrot.slane %v483, 2
    %v548 = vsel %vm120, %v543, %v547
    %v549 = vrot.slane %v485, 2
    %v550 = vsel %vm120, %v545, %v549
    %v551 = vrot.slane %v487, 2
    %v552 = vsel %vm120, %v547, %v551
    %v553 = vrot.slane %v491, 2
    %v554 = vsel %vm120, %v549, %v553
    %v555 = vrot.slane %v493, 2
    %v556 = vsel %vm120, %v551, %v555
    %v557 = vrot.slane %v495, 2
    %v558 = vrot.slane %v501, 2
    %v559 = vsel %vm120, %v557, %v558
    %v560 = vrot.slane %v497, 2
    %v561 = vrot.slane %v503, 2
    %v562 = vsel %vm120, %v560, %v561
    %v563 = vrot.slane %v505, 2
    %v564 = vsel %vm120, %v558, %v563
    %v565 = vrot.slane %v507, 2
    %v566 = vsel %vm120, %v561, %v565
    %v567 = vrot.slane %v511, 2
    %v568 = vsel %vm120, %v563, %v567
    %v569 = vrot.slane %v513, 2
    %v570 = vsel %vm120, %v565, %v569
    %v571 = vrot.slane %v515, 2
    %v572 = vsel %vm120, %v567, %v571
    %v573 = vrot.slane %v517, 2
    %v574 = vsel %vm120, %v569, %v573
    %v591 = vadd.f32 %v391, %v541
    %v592 = vadd.f32 %v392, %v544
    %v593 = vadd.f32 %v393, %v546
    %v594 = vadd.f32 %v394, %v548
    %v595 = vadd.f32 %v395, %v550
    %v596 = vadd.f32 %v396, %v552
    %v597 = vadd.f32 %v397, %v554
    %v598 = vadd.f32 %v398, %v556
    %v599 = vadd.f32 %v399, %v559
    %v600 = vadd.f32 %v400, %v562
    %v601 = vadd.f32 %v401, %v564
    %v602 = vadd.f32 %v402, %v566
    %v603 = vadd.f32 %v403, %v568
    %v604 = vadd.f32 %v404, %v570
    %v605 = vadd.f32 %v405, %v572
    %v606 = vadd.f32 %v406, %v574
    %s607 = scalar_lea.vmem [#allocation2], 96
    %v608 = vld [vmem:[%s607] sm:$0xff]
    %v609 = vld [vmem:[%s607 + $0x8] sm:$0xff]
    %v610 = vld [vmem:[%s607 + $0x10] sm:$0xff]
    %v611 = vld [vmem:[%s607 + $0x18] sm:$0x33]
    %v616 = vunpack.c.l.b16 %v608
    %v617 = vunpack.c.h.b16 %v608
    %v618 = vunpack.c.l.b16 %v609
    %v619 = vunpack.c.h.b16 %v609
    %v620 = vunpack.c.l.b16 %v610
    %v621 = vunpack.c.h.b16 %v610
    %v622 = vunpack.c.l.b16 %v611
    %v623 = vunpack.c.h.b16 %v611
    %v624 = vpack.c.b16 %v618, %v616
    %v625 = vpack.c.b16 %v619, %v617
    %v626 = vpack.c.b16 %v622, %v620
    %v627 = vpack.c.b16 %v623, %v621
    %v631 = vsel %vm120, %v626, 0
    %v634 = vsel %vm120, %v627, 0
    %636 = vmatprep.subr.bf16.mxu0 0
    %637 = vmatpush1.bf16.msra.mxu0 0
    %638 = vmatprep.subr.bf16.mxu0 0
    %639 = vmatpush1.bf16.msra.mxu0 0
    %640 = vmatprep.subr.bf16.mxu0 0
    %641 = vmatpush1.bf16.msra.mxu0 0
    %642 = vmatprep.subr.bf16.mxu0 0
    %643 = vmatpush1.bf16.msra.mxu0 0
    %644 = vmatprep.subr.bf16.mxu0 0
    %645 = vmatpush1.bf16.msra.mxu0 0
    %646 = vmatprep.subr.bf16.mxu0 0
    %647 = vmatpush1.bf16.msra.mxu0 0
    %648 = vmatprep.subr.bf16.mxu0 %v634
    %649 = vmatpush1.bf16.msra.mxu0 %v631
    %650 = vmatprep.subr.bf16.mxu0 %v625
    %651 = vmatpush1.bf16.msra.mxu0 %v624
    %652 = vmatprep.subr.bf16.mxu0 0
    %653 = vmatpush2.bf16.msra.mxu0 0
    %654 = vmatprep.subr.bf16.mxu0 0
    %655 = vmatpush2.bf16.msra.mxu0 0
    %656 = vmatprep.subr.bf16.mxu0 0
    %657 = vmatpush2.bf16.msra.mxu0 0
    %658 = vmatprep.subr.bf16.mxu0 0
    %659 = vmatpush2.bf16.msra.mxu0 0
    %660 = vmatprep.subr.bf16.mxu0 0
    %661 = vmatpush2.bf16.msra.mxu0 0
    %662 = vmatprep.subr.bf16.mxu0 0
    %663 = vmatpush2.bf16.msra.mxu0 0
    %664 = vmatprep.subr.bf16.mxu0 0
    %665 = vmatpush2.bf16.msra.mxu0 0
    %666 = vmatprep.subr.bf16.mxu0 0
    %667 = vmatpush2.bf16.msra.mxu0 0
    %668 = vmatprep.mubr.bf16.mxu0 0
    %669 = vmatmul.mubr.bf16.gmra.mxu0 %v106
    %v670 = vpop.f32.mrf.mxu0
    %v671 = vadd.f32 0.0, %v670
    %v672 = vpop.f32.mrf.mxu0
    %v673 = vadd.f32 0.0, %v672
    %v674 = vpop.f32.mrf.mxu0
    %v675 = vadd.f32 0.0, %v674
    %v676 = vpop.f32.mrf.mxu0
    %v677 = vadd.f32 0.0, %v676
    %678 = vmatprep.mubr.bf16.mxu0 0
    %679 = vmatmul.mubr.bf16.gmra.mxu0 %v109
    %v680 = vpop.f32.mrf.mxu0
    %v681 = vadd.f32 0.0, %v680
    %v682 = vpop.f32.mrf.mxu0
    %v683 = vadd.f32 0.0, %v682
    %v684 = vpop.f32.mrf.mxu0
    %v685 = vadd.f32 0.0, %v684
    %v686 = vpop.f32.mrf.mxu0
    %v687 = vadd.f32 0.0, %v686
    %688 = vmatprep.mubr.bf16.mxu0 0
    %689 = vmatmul.mubr.bf16.gmra.mxu0 %v112
    %v690 = vpop.f32.mrf.mxu0
    %v691 = vadd.f32 0.0, %v690
    %v692 = vpop.f32.mrf.mxu0
    %v693 = vadd.f32 0.0, %v692
    %v694 = vpop.f32.mrf.mxu0
    %v695 = vadd.f32 0.0, %v694
    %v696 = vpop.f32.mrf.mxu0
    %v697 = vadd.f32 0.0, %v696
    %698 = vmatprep.mubr.bf16.mxu0 0
    %699 = vmatmul.mubr.bf16.gmra.mxu0 %v115
    %v700 = vpop.f32.mrf.mxu0
    %v701 = vadd.f32 0.0, %v700
    %v702 = vpop.f32.mrf.mxu0
    %v703 = vadd.f32 0.0, %v702
    %v704 = vpop.f32.mrf.mxu0
    %v705 = vadd.f32 0.0, %v704
    %v706 = vpop.f32.mrf.mxu0
    %v707 = vadd.f32 0.0, %v706
    %708 = vmatprep.mubr.bf16.mxu0 0
    %709 = vmatmul.mubr.bf16.gmra.mxu0 %v118
    %v710 = vpop.f32.mrf.mxu0
    %v711 = vadd.f32 0.0, %v710
    %v712 = vpop.f32.mrf.mxu0
    %v713 = vadd.f32 0.0, %v712
    %v714 = vpop.f32.mrf.mxu0
    %v715 = vadd.f32 0.0, %v714
    %v716 = vpop.f32.mrf.mxu0
    %v717 = vadd.f32 0.0, %v716
    %718 = vdwg.mxu0
    %vm739 = vcmask 1044480
    %v740 = vrot.slane %v671, 3
    %v741 = vrot.slane %v675, 3
    %v742 = vsel %vm739, %v740, %v741
    %v743 = vrot.slane %v673, 3
    %v744 = vrot.slane %v677, 3
    %v745 = vsel %vm739, %v743, %v744
    %v746 = vrot.slane %v681, 3
    %v747 = vsel %vm739, %v741, %v746
    %v748 = vrot.slane %v683, 3
    %v749 = vsel %vm739, %v744, %v748
    %v750 = vrot.slane %v685, 3
    %v751 = vsel %vm739, %v746, %v750
    %v752 = vrot.slane %v687, 3
    %v753 = vsel %vm739, %v748, %v752
    %v754 = vrot.slane %v691, 3
    %v755 = vsel %vm739, %v750, %v754
    %v756 = vrot.slane %v693, 3
    %v757 = vsel %vm739, %v752, %v756
    %v758 = vrot.slane %v695, 3
    %v759 = vrot.slane %v701, 3
    %v760 = vsel %vm739, %v758, %v759
    %v761 = vrot.slane %v697, 3
    %v762 = vrot.slane %v703, 3
    %v763 = vsel %vm739, %v761, %v762
    %v764 = vrot.slane %v705, 3
    %v765 = vsel %vm739, %v759, %v764
    %v766 = vrot.slane %v707, 3
    %v767 = vsel %vm739, %v762, %v766
    %v768 = vrot.slane %v711, 3
    %v769 = vsel %vm739, %v764, %v768
    %v770 = vrot.slane %v713, 3
    %v771 = vsel %vm739, %v766, %v770
    %v772 = vrot.slane %v715, 3
    %v773 = vsel %vm739, %v768, %v772
    %v774 = vrot.slane %v717, 3
    %v775 = vsel %vm739, %v770, %v774
    %v792 = vadd.f32 %v591, %v742
    %v793 = vadd.f32 %v592, %v745
    %v794 = vadd.f32 %v593, %v747
    %v795 = vadd.f32 %v594, %v749
    %v796 = vadd.f32 %v595, %v751
    %v797 = vadd.f32 %v596, %v753
    %v798 = vadd.f32 %v597, %v755
    %v799 = vadd.f32 %v598, %v757
    %v800 = vadd.f32 %v599, %v760
    %v801 = vadd.f32 %v600, %v763
    %v802 = vadd.f32 %v601, %v765
    %v803 = vadd.f32 %v602, %v767
    %v804 = vadd.f32 %v603, %v769
    %v805 = vadd.f32 %v604, %v771
    %v806 = vadd.f32 %v605, %v773
    %v807 = vadd.f32 %v606, %v775
    %s808 = scalar_lea.vmem [#allocation2], 128
    %v809 = vld [vmem:[%s808] sm:$0xff]
    %v810 = vld [vmem:[%s808 + $0x8] sm:$0xff]
    %v811 = vld [vmem:[%s808 + $0x10] sm:$0xff]
    %v812 = vld [vmem:[%s808 + $0x18] sm:$0x33]
    %v817 = vunpack.c.l.b16 %v809
    %v818 = vunpack.c.h.b16 %v809
    %v819 = vunpack.c.l.b16 %v810
    %v820 = vunpack.c.h.b16 %v810
    %v821 = vunpack.c.l.b16 %v811
    %v822 = vunpack.c.h.b16 %v811
    %v823 = vunpack.c.l.b16 %v812
    %v824 = vunpack.c.h.b16 %v812
    %v825 = vpack.c.b16 %v819, %v817
    %v826 = vpack.c.b16 %v820, %v818
    %v827 = vpack.c.b16 %v823, %v821
    %v828 = vpack.c.b16 %v824, %v822
    %v832 = vsel %vm120, %v827, 0
    %v835 = vsel %vm120, %v828, 0
    %837 = vmatprep.subr.bf16.mxu0 0
    %838 = vmatpush1.bf16.msra.mxu0 0
    %839 = vmatprep.subr.bf16.mxu0 0
    %840 = vmatpush1.bf16.msra.mxu0 0
    %841 = vmatprep.subr.bf16.mxu0 0
    %842 = vmatpush1.bf16.msra.mxu0 0
    %843 = vmatprep.subr.bf16.mxu0 0
    %844 = vmatpush1.bf16.msra.mxu0 0
    %845 = vmatprep.subr.bf16.mxu0 0
    %846 = vmatpush1.bf16.msra.mxu0 0
    %847 = vmatprep.subr.bf16.mxu0 0
    %848 = vmatpush1.bf16.msra.mxu0 0
    %849 = vmatprep.subr.bf16.mxu0 %v835
    %850 = vmatpush1.bf16.msra.mxu0 %v832
    %851 = vmatprep.subr.bf16.mxu0 %v826
    %852 = vmatpush1.bf16.msra.mxu0 %v825
    %853 = vmatprep.subr.bf16.mxu0 0
    %854 = vmatpush2.bf16.msra.mxu0 0
    %855 = vmatprep.subr.bf16.mxu0 0
    %856 = vmatpush2.bf16.msra.mxu0 0
    %857 = vmatprep.subr.bf16.mxu0 0
    %858 = vmatpush2.bf16.msra.mxu0 0
    %859 = vmatprep.subr.bf16.mxu0 0
    %860 = vmatpush2.bf16.msra.mxu0 0
    %861 = vmatprep.subr.bf16.mxu0 0
    %862 = vmatpush2.bf16.msra.mxu0 0
    %863 = vmatprep.subr.bf16.mxu0 0
    %864 = vmatpush2.bf16.msra.mxu0 0
    %865 = vmatprep.subr.bf16.mxu0 0
    %866 = vmatpush2.bf16.msra.mxu0 0
    %867 = vmatprep.subr.bf16.mxu0 0
    %868 = vmatpush2.bf16.msra.mxu0 0
    %869 = vmatprep.mubr.bf16.mxu0 0
    %870 = vmatmul.mubr.bf16.gmra.mxu0 %v106
    %v871 = vpop.f32.mrf.mxu0
    %v872 = vadd.f32 0.0, %v871
    %v873 = vpop.f32.mrf.mxu0
    %v874 = vadd.f32 0.0, %v873
    %v875 = vpop.f32.mrf.mxu0
    %v876 = vadd.f32 0.0, %v875
    %v877 = vpop.f32.mrf.mxu0
    %v878 = vadd.f32 0.0, %v877
    %879 = vmatprep.mubr.bf16.mxu0 0
    %880 = vmatmul.mubr.bf16.gmra.mxu0 %v109
    %v881 = vpop.f32.mrf.mxu0
    %v882 = vadd.f32 0.0, %v881
    %v883 = vpop.f32.mrf.mxu0
    %v884 = vadd.f32 0.0, %v883
    %v885 = vpop.f32.mrf.mxu0
    %v886 = vadd.f32 0.0, %v885
    %v887 = vpop.f32.mrf.mxu0
    %v888 = vadd.f32 0.0, %v887
    %889 = vmatprep.mubr.bf16.mxu0 0
    %890 = vmatmul.mubr.bf16.gmra.mxu0 %v112
    %v891 = vpop.f32.mrf.mxu0
    %v892 = vadd.f32 0.0, %v891
    %v893 = vpop.f32.mrf.mxu0
    %v894 = vadd.f32 0.0, %v893
    %v895 = vpop.f32.mrf.mxu0
    %v896 = vadd.f32 0.0, %v895
    %v897 = vpop.f32.mrf.mxu0
    %v898 = vadd.f32 0.0, %v897
    %899 = vmatprep.mubr.bf16.mxu0 0
    %900 = vmatmul.mubr.bf16.gmra.mxu0 %v115
    %v901 = vpop.f32.mrf.mxu0
    %v902 = vadd.f32 0.0, %v901
    %v903 = vpop.f32.mrf.mxu0
    %v904 = vadd.f32 0.0, %v903
    %v905 = vpop.f32.mrf.mxu0
    %v906 = vadd.f32 0.0, %v905
    %v907 = vpop.f32.mrf.mxu0
    %v908 = vadd.f32 0.0, %v907
    %909 = vmatprep.mubr.bf16.mxu0 0
    %910 = vmatmul.mubr.bf16.gmra.mxu0 %v118
    %v911 = vpop.f32.mrf.mxu0
    %v912 = vadd.f32 0.0, %v911
    %v913 = vpop.f32.mrf.mxu0
    %v914 = vadd.f32 0.0, %v913
    %v915 = vpop.f32.mrf.mxu0
    %v916 = vadd.f32 0.0, %v915
    %v917 = vpop.f32.mrf.mxu0
    %v918 = vadd.f32 0.0, %v917
    %919 = vdwg.mxu0
    %vm940 = vcmask 1043456
    %v941 = vrot.slane %v872, 4
    %v942 = vrot.slane %v876, 4
    %v943 = vsel %vm940, %v941, %v942
    %v944 = vrot.slane %v874, 4
    %v945 = vrot.slane %v878, 4
    %v946 = vsel %vm940, %v944, %v945
    %v947 = vrot.slane %v882, 4
    %v948 = vsel %vm940, %v942, %v947
    %v949 = vrot.slane %v884, 4
    %v950 = vsel %vm940, %v945, %v949
    %v951 = vrot.slane %v886, 4
    %v952 = vsel %vm940, %v947, %v951
    %v953 = vrot.slane %v888, 4
    %v954 = vsel %vm940, %v949, %v953
    %v955 = vrot.slane %v892, 4
    %v956 = vsel %vm940, %v951, %v955
    %v957 = vrot.slane %v894, 4
    %v958 = vsel %vm940, %v953, %v957
    %v959 = vrot.slane %v896, 4
    %v960 = vrot.slane %v902, 4
    %v961 = vsel %vm940, %v959, %v960
    %v962 = vrot.slane %v898, 4
    %v963 = vrot.slane %v904, 4
    %v964 = vsel %vm940, %v962, %v963
    %v965 = vrot.slane %v906, 4
    %v966 = vsel %vm940, %v960, %v965
    %v967 = vrot.slane %v908, 4
    %v968 = vsel %vm940, %v963, %v967
    %v969 = vrot.slane %v912, 4
    %v970 = vsel %vm940, %v965, %v969
    %v971 = vrot.slane %v914, 4
    %v972 = vsel %vm940, %v967, %v971
    %v973 = vrot.slane %v916, 4
    %v974 = vsel %vm940, %v969, %v973
    %v975 = vrot.slane %v918, 4
    %v976 = vsel %vm940, %v971, %v975
    %v993 = vadd.f32 %v792, %v943
    %v994 = vadd.f32 %v793, %v946
    %v995 = vadd.f32 %v794, %v948
    %v996 = vadd.f32 %v795, %v950
    %v997 = vadd.f32 %v796, %v952
    %v998 = vadd.f32 %v797, %v954
    %v999 = vadd.f32 %v798, %v956
    %v1000 = vadd.f32 %v799, %v958
    %v1001 = vadd.f32 %v800, %v961
    %v1002 = vadd.f32 %v801, %v964
    %v1003 = vadd.f32 %v802, %v966
    %v1004 = vadd.f32 %v803, %v968
    %v1005 = vadd.f32 %v804, %v970
    %v1006 = vadd.f32 %v805, %v972
    %v1007 = vadd.f32 %v806, %v974
    %v1008 = vadd.f32 %v807, %v976
    %v1009 = vmax.f32 %v993, %v994
    %v1010 = vmax.f32 %v995, %v996
    %v1011 = vmax.f32 %v997, %v998
    %v1012 = vmax.f32 %v999, %v1000
    %v1013 = vmax.f32 %v1001, %v1002
    %v1014 = vmax.f32 %v1003, %v1004
    %v1015 = vmax.f32 %v1005, %v1006
    %v1016 = vmax.f32 %v1007, %v1008
    %v1025 = vcombine.high %v1009, %v1009
    %v1027 = vunpack.c.l.s4 1983009808
    %v1028 = vunpack.c.0.s8 %v1027
    %v1029 = vlaneseq
    %v1030 = vshrl.u32 %v1029, 7
    %v1031 = vsub.s32 %v1028, %v1030
    %v1032 = vrot.slane %v1009, %v1031
    %v1034 = vunpack.c.l.s4 1983009808
    %v1035 = vunpack.c.0.s8 %v1034
    %v1036 = vlaneseq
    %v1037 = vshrl.u32 %v1036, 7
    %v1038 = vsub.s32 %v1035, %v1037
    %v1039 = vrot.slane %v1025, %v1038
    %v1040 = vcombine.high %v1032, %v1032
    %v1041 = vcombine.high %v1039, %v1039
    %v1042 = vcombine.high %v1010, %v1010
    %v1044 = vunpack.c.l.s4 1983009808
    %v1045 = vunpack.c.0.s8 %v1044
    %v1046 = vlaneseq
    %v1047 = vshrl.u32 %v1046, 7
    %v1048 = vsub.s32 %v1045, %v1047
    %v1049 = vrot.slane %v1010, %v1048
    %v1051 = vunpack.c.l.s4 1983009808
    %v1052 = vunpack.c.0.s8 %v1051
    %v1053 = vlaneseq
    %v1054 = vshrl.u32 %v1053, 7
    %v1055 = vsub.s32 %v1052, %v1054
    %v1056 = vrot.slane %v1042, %v1055
    %v1057 = vcombine.high %v1049, %v1049
    %v1058 = vcombine.high %v1056, %v1056
    %v1059 = vcombine.high %v1011, %v1011
    %v1061 = vunpack.c.l.s4 1983009808
    %v1062 = vunpack.c.0.s8 %v1061
    %v1063 = vlaneseq
    %v1064 = vshrl.u32 %v1063, 7
    %v1065 = vsub.s32 %v1062, %v1064
    %v1066 = vrot.slane %v1011, %v1065
    %v1068 = vunpack.c.l.s4 1983009808
    %v1069 = vunpack.c.0.s8 %v1068
    %v1070 = vlaneseq
    %v1071 = vshrl.u32 %v1070, 7
    %v1072 = vsub.s32 %v1069, %v1071
    %v1073 = vrot.slane %v1059, %v1072
    %v1074 = vcombine.high %v1066, %v1066
    %v1075 = vcombine.high %v1073, %v1073
    %v1076 = vcombine.high %v1012, %v1012
    %v1078 = vunpack.c.l.s4 1983009808
    %v1079 = vunpack.c.0.s8 %v1078
    %v1080 = vlaneseq
    %v1081 = vshrl.u32 %v1080, 7
    %v1082 = vsub.s32 %v1079, %v1081
    %v1083 = vrot.slane %v1012, %v1082
    %v1085 = vunpack.c.l.s4 1983009808
    %v1086 = vunpack.c.0.s8 %v1085
    %v1087 = vlaneseq
    %v1088 = vshrl.u32 %v1087, 7
    %v1089 = vsub.s32 %v1086, %v1088
    %v1090 = vrot.slane %v1076, %v1089
    %v1091 = vcombine.high %v1083, %v1083
    %v1092 = vcombine.high %v1090, %v1090
    %v1093 = vcombine.high %v1013, %v1013
    %v1095 = vunpack.c.l.s4 1983009808
    %v1096 = vunpack.c.0.s8 %v1095
    %v1097 = vlaneseq
    %v1098 = vshrl.u32 %v1097, 7
    %v1099 = vsub.s32 %v1096, %v1098
    %v1100 = vrot.slane %v1013, %v1099
    %v1102 = vunpack.c.l.s4 1983009808
    %v1103 = vunpack.c.0.s8 %v1102
    %v1104 = vlaneseq
    %v1105 = vshrl.u32 %v1104, 7
    %v1106 = vsub.s32 %v1103, %v1105
    %v1107 = vrot.slane %v1093, %v1106
    %v1108 = vcombine.high %v1100, %v1100
    %v1109 = vcombine.high %v1107, %v1107
    %v1110 = vcombine.high %v1014, %v1014
    %v1112 = vunpack.c.l.s4 1983009808
    %v1113 = vunpack.c.0.s8 %v1112
    %v1114 = vlaneseq
    %v1115 = vshrl.u32 %v1114, 7
    %v1116 = vsub.s32 %v1113, %v1115
    %v1117 = vrot.slane %v1014, %v1116
    %v1119 = vunpack.c.l.s4 1983009808
    %v1120 = vunpack.c.0.s8 %v1119
    %v1121 = vlaneseq
    %v1122 = vshrl.u32 %v1121, 7
    %v1123 = vsub.s32 %v1120, %v1122
    %v1124 = vrot.slane %v1110, %v1123
    %v1125 = vcombine.high %v1117, %v1117
    %v1126 = vcombine.high %v1124, %v1124
    %v1127 = vcombine.high %v1015, %v1015
    %v1129 = vunpack.c.l.s4 1983009808
    %v1130 = vunpack.c.0.s8 %v1129
    %v1131 = vlaneseq
    %v1132 = vshrl.u32 %v1131, 7
    %v1133 = vsub.s32 %v1130, %v1132
    %v1134 = vrot.slane %v1015, %v1133
    %v1136 = vunpack.c.l.s4 1983009808
    %v1137 = vunpack.c.0.s8 %v1136
    %v1138 = vlaneseq
    %v1139 = vshrl.u32 %v1138, 7
    %v1140 = vsub.s32 %v1137, %v1139
    %v1141 = vrot.slane %v1127, %v1140
    %v1142 = vcombine.high %v1134, %v1134
    %v1143 = vcombine.high %v1141, %v1141
    %v1144 = vcombine.high %v1016, %v1016
    %v1146 = vunpack.c.l.s4 1983009808
    %v1147 = vunpack.c.0.s8 %v1146
    %v1148 = vlaneseq
    %v1149 = vshrl.u32 %v1148, 7
    %v1150 = vsub.s32 %v1147, %v1149
    %v1151 = vrot.slane %v1016, %v1150
    %v1153 = vunpack.c.l.s4 1983009808
    %v1154 = vunpack.c.0.s8 %v1153
    %v1155 = vlaneseq
    %v1156 = vshrl.u32 %v1155, 7
    %v1157 = vsub.s32 %v1154, %v1156
    %v1158 = vrot.slane %v1144, %v1157
    %v1159 = vcombine.high %v1151, %v1151
    %v1160 = vcombine.high %v1158, %v1158
    %vm1193 = vcmask 1041408
    %v1194 = vsel %vm1193, %v1032, -inf
    %v1195 = vrot.slane %v1194, 4
    %v1196 = vmax.f32 %v1194, %v1195
    %v1197 = vrot.slane %v1196, 2
    %v1198 = vmax.f32 %v1196, %v1197
    %v1199 = vrot.slane %v1198, 1
    %v1200 = vmax.f32 %v1198, %v1199
    %v1201 = vsel %vm1193, %v1040, -inf
    %v1202 = vrot.slane %v1201, 4
    %v1203 = vmax.f32 %v1201, %v1202
    %v1204 = vrot.slane %v1203, 2
    %v1205 = vmax.f32 %v1203, %v1204
    %v1206 = vrot.slane %v1205, 1
    %v1207 = vmax.f32 %v1205, %v1206
    %v1208 = vsel %vm1193, %v1039, -inf
    %v1209 = vrot.slane %v1208, 4
    %v1210 = vmax.f32 %v1208, %v1209
    %v1211 = vrot.slane %v1210, 2
    %v1212 = vmax.f32 %v1210, %v1211
    %v1213 = vrot.slane %v1212, 1
    %v1214 = vmax.f32 %v1212, %v1213
    %v1215 = vsel %vm1193, %v1041, -inf
    %v1216 = vrot.slane %v1215, 4
    %v1217 = vmax.f32 %v1215, %v1216
    %v1218 = vrot.slane %v1217, 2
    %v1219 = vmax.f32 %v1217, %v1218
    %v1220 = vrot.slane %v1219, 1
    %v1221 = vmax.f32 %v1219, %v1220
    %v1222 = vsel %vm1193, %v1049, -inf
    %v1223 = vrot.slane %v1222, 4
    %v1224 = vmax.f32 %v1222, %v1223
    %v1225 = vrot.slane %v1224, 2
    %v1226 = vmax.f32 %v1224, %v1225
    %v1227 = vrot.slane %v1226, 1
    %v1228 = vmax.f32 %v1226, %v1227
    %v1229 = vsel %vm1193, %v1057, -inf
    %v1230 = vrot.slane %v1229, 4
    %v1231 = vmax.f32 %v1229, %v1230
    %v1232 = vrot.slane %v1231, 2
    %v1233 = vmax.f32 %v1231, %v1232
    %v1234 = vrot.slane %v1233, 1
    %v1235 = vmax.f32 %v1233, %v1234
    %v1236 = vsel %vm1193, %v1056, -inf
    %v1237 = vrot.slane %v1236, 4
    %v1238 = vmax.f32 %v1236, %v1237
    %v1239 = vrot.slane %v1238, 2
    %v1240 = vmax.f32 %v1238, %v1239
    %v1241 = vrot.slane %v1240, 1
    %v1242 = vmax.f32 %v1240, %v1241
    %v1243 = vsel %vm1193, %v1058, -inf
    %v1244 = vrot.slane %v1243, 4
    %v1245 = vmax.f32 %v1243, %v1244
    %v1246 = vrot.slane %v1245, 2
    %v1247 = vmax.f32 %v1245, %v1246
    %v1248 = vrot.slane %v1247, 1
    %v1249 = vmax.f32 %v1247, %v1248
    %v1250 = vsel %vm1193, %v1066, -inf
    %v1251 = vrot.slane %v1250, 4
    %v1252 = vmax.f32 %v1250, %v1251
    %v1253 = vrot.slane %v1252, 2
    %v1254 = vmax.f32 %v1252, %v1253
    %v1255 = vrot.slane %v1254, 1
    %v1256 = vmax.f32 %v1254, %v1255
    %v1257 = vsel %vm1193, %v1074, -inf
    %v1258 = vrot.slane %v1257, 4
    %v1259 = vmax.f32 %v1257, %v1258
    %v1260 = vrot.slane %v1259, 2
    %v1261 = vmax.f32 %v1259, %v1260
    %v1262 = vrot.slane %v1261, 1
    %v1263 = vmax.f32 %v1261, %v1262
    %v1264 = vsel %vm1193, %v1073, -inf
    %v1265 = vrot.slane %v1264, 4
    %v1266 = vmax.f32 %v1264, %v1265
    %v1267 = vrot.slane %v1266, 2
    %v1268 = vmax.f32 %v1266, %v1267
    %v1269 = vrot.slane %v1268, 1
    %v1270 = vmax.f32 %v1268, %v1269
    %v1271 = vsel %vm1193, %v1075, -inf
    %v1272 = vrot.slane %v1271, 4
    %v1273 = vmax.f32 %v1271, %v1272
    %v1274 = vrot.slane %v1273, 2
    %v1275 = vmax.f32 %v1273, %v1274
    %v1276 = vrot.slane %v1275, 1
    %v1277 = vmax.f32 %v1275, %v1276
    %v1278 = vsel %vm1193, %v1083, -inf
    %v1279 = vrot.slane %v1278, 4
    %v1280 = vmax.f32 %v1278, %v1279
    %v1281 = vrot.slane %v1280, 2
    %v1282 = vmax.f32 %v1280, %v1281
    %v1283 = vrot.slane %v1282, 1
    %v1284 = vmax.f32 %v1282, %v1283
    %v1285 = vsel %vm1193, %v1091, -inf
    %v1286 = vrot.slane %v1285, 4
    %v1287 = vmax.f32 %v1285, %v1286
    %v1288 = vrot.slane %v1287, 2
    %v1289 = vmax.f32 %v1287, %v1288
    %v1290 = vrot.slane %v1289, 1
    %v1291 = vmax.f32 %v1289, %v1290
    %v1292 = vsel %vm1193, %v1090, -inf
    %v1293 = vrot.slane %v1292, 4
    %v1294 = vmax.f32 %v1292, %v1293
    %v1295 = vrot.slane %v1294, 2
    %v1296 = vmax.f32 %v1294, %v1295
    %v1297 = vrot.slane %v1296, 1
    %v1298 = vmax.f32 %v1296, %v1297
    %v1299 = vsel %vm1193, %v1092, -inf
    %v1300 = vrot.slane %v1299, 4
    %v1301 = vmax.f32 %v1299, %v1300
    %v1302 = vrot.slane %v1301, 2
    %v1303 = vmax.f32 %v1301, %v1302
    %v1304 = vrot.slane %v1303, 1
    %v1305 = vmax.f32 %v1303, %v1304
    %v1306 = vsel %vm1193, %v1100, -inf
    %v1307 = vrot.slane %v1306, 4
    %v1308 = vmax.f32 %v1306, %v1307
    %v1309 = vrot.slane %v1308, 2
    %v1310 = vmax.f32 %v1308, %v1309
    %v1311 = vrot.slane %v1310, 1
    %v1312 = vmax.f32 %v1310, %v1311
    %v1313 = vsel %vm1193, %v1108, -inf
    %v1314 = vrot.slane %v1313, 4
    %v1315 = vmax.f32 %v1313, %v1314
    %v1316 = vrot.slane %v1315, 2
    %v1317 = vmax.f32 %v1315, %v1316
    %v1318 = vrot.slane %v1317, 1
    %v1319 = vmax.f32 %v1317, %v1318
    %v1320 = vsel %vm1193, %v1107, -inf
    %v1321 = vrot.slane %v1320, 4
    %v1322 = vmax.f32 %v1320, %v1321
    %v1323 = vrot.slane %v1322, 2
    %v1324 = vmax.f32 %v1322, %v1323
    %v1325 = vrot.slane %v1324, 1
    %v1326 = vmax.f32 %v1324, %v1325
    %v1327 = vsel %vm1193, %v1109, -inf
    %v1328 = vrot.slane %v1327, 4
    %v1329 = vmax.f32 %v1327, %v1328
    %v1330 = vrot.slane %v1329, 2
    %v1331 = vmax.f32 %v1329, %v1330
    %v1332 = vrot.slane %v1331, 1
    %v1333 = vmax.f32 %v1331, %v1332
    %v1334 = vsel %vm1193, %v1117, -inf
    %v1335 = vrot.slane %v1334, 4
    %v1336 = vmax.f32 %v1334, %v1335
    %v1337 = vrot.slane %v1336, 2
    %v1338 = vmax.f32 %v1336, %v1337
    %v1339 = vrot.slane %v1338, 1
    %v1340 = vmax.f32 %v1338, %v1339
    %v1341 = vsel %vm1193, %v1125, -inf
    %v1342 = vrot.slane %v1341, 4
    %v1343 = vmax.f32 %v1341, %v1342
    %v1344 = vrot.slane %v1343, 2
    %v1345 = vmax.f32 %v1343, %v1344
    %v1346 = vrot.slane %v1345, 1
    %v1347 = vmax.f32 %v1345, %v1346
    %v1348 = vsel %vm1193, %v1124, -inf
    %v1349 = vrot.slane %v1348, 4
    %v1350 = vmax.f32 %v1348, %v1349
    %v1351 = vrot.slane %v1350, 2
    %v1352 = vmax.f32 %v1350, %v1351
    %v1353 = vrot.slane %v1352, 1
    %v1354 = vmax.f32 %v1352, %v1353
    %v1355 = vsel %vm1193, %v1126, -inf
    %v1356 = vrot.slane %v1355, 4
    %v1357 = vmax.f32 %v1355, %v1356
    %v1358 = vrot.slane %v1357, 2
    %v1359 = vmax.f32 %v1357, %v1358
    %v1360 = vrot.slane %v1359, 1
    %v1361 = vmax.f32 %v1359, %v1360
    %v1362 = vsel %vm1193, %v1134, -inf
    %v1363 = vrot.slane %v1362, 4
    %v1364 = vmax.f32 %v1362, %v1363
    %v1365 = vrot.slane %v1364, 2
    %v1366 = vmax.f32 %v1364, %v1365
    %v1367 = vrot.slane %v1366, 1
    %v1368 = vmax.f32 %v1366, %v1367
    %v1369 = vsel %vm1193, %v1142, -inf
    %v1370 = vrot.slane %v1369, 4
    %v1371 = vmax.f32 %v1369, %v1370
    %v1372 = vrot.slane %v1371, 2
    %v1373 = vmax.f32 %v1371, %v1372
    %v1374 = vrot.slane %v1373, 1
    %v1375 = vmax.f32 %v1373, %v1374
    %v1376 = vsel %vm1193, %v1141, -inf
    %v1377 = vrot.slane %v1376, 4
    %v1378 = vmax.f32 %v1376, %v1377
    %v1379 = vrot.slane %v1378, 2
    %v1380 = vmax.f32 %v1378, %v1379
    %v1381 = vrot.slane %v1380, 1
    %v1382 = vmax.f32 %v1380, %v1381
    %v1383 = vsel %vm1193, %v1143, -inf
    %v1384 = vrot.slane %v1383, 4
    %v1385 = vmax.f32 %v1383, %v1384
    %v1386 = vrot.slane %v1385, 2
    %v1387 = vmax.f32 %v1385, %v1386
    %v1388 = vrot.slane %v1387, 1
    %v1389 = vmax.f32 %v1387, %v1388
    %v1390 = vsel %vm1193, %v1151, -inf
    %v1391 = vrot.slane %v1390, 4
    %v1392 = vmax.f32 %v1390, %v1391
    %v1393 = vrot.slane %v1392, 2
    %v1394 = vmax.f32 %v1392, %v1393
    %v1395 = vrot.slane %v1394, 1
    %v1396 = vmax.f32 %v1394, %v1395
    %v1397 = vsel %vm1193, %v1159, -inf
    %v1398 = vrot.slane %v1397, 4
    %v1399 = vmax.f32 %v1397, %v1398
    %v1400 = vrot.slane %v1399, 2
    %v1401 = vmax.f32 %v1399, %v1400
    %v1402 = vrot.slane %v1401, 1
    %v1403 = vmax.f32 %v1401, %v1402
    %v1404 = vsel %vm1193, %v1158, -inf
    %v1405 = vrot.slane %v1404, 4
    %v1406 = vmax.f32 %v1404, %v1405
    %v1407 = vrot.slane %v1406, 2
    %v1408 = vmax.f32 %v1406, %v1407
    %v1409 = vrot.slane %v1408, 1
    %v1410 = vmax.f32 %v1408, %v1409
    %v1411 = vsel %vm1193, %v1160, -inf
    %v1412 = vrot.slane %v1411, 4
    %v1413 = vmax.f32 %v1411, %v1412
    %v1414 = vrot.slane %v1413, 2
    %v1415 = vmax.f32 %v1413, %v1414
    %v1416 = vrot.slane %v1415, 1
    %v1417 = vmax.f32 %v1415, %v1416
    %v1418 = vld [vmem:[%s2] sm:$0x1]
    %v1420 = vlaneseq
    %v1421 = vshrl.u32 %v1420, 7
    %v1422 = vsub.s32 0, %v1421
    %v1423 = vrot.slane %v1418, %v1422
    %v1425 = vadd.f32 %v1200, %v1423
    %v1426 = vadd.f32 %v1207, %v1423
    %v1427 = vadd.f32 %v1214, %v1423
    %v1428 = vadd.f32 %v1221, %v1423
    %v1429 = vadd.f32 %v1228, %v1423
    %v1430 = vadd.f32 %v1235, %v1423
    %v1431 = vadd.f32 %v1242, %v1423
    %v1432 = vadd.f32 %v1249, %v1423
    %v1433 = vadd.f32 %v1256, %v1423
    %v1434 = vadd.f32 %v1263, %v1423
    %v1435 = vadd.f32 %v1270, %v1423
    %v1436 = vadd.f32 %v1277, %v1423
    %v1437 = vadd.f32 %v1284, %v1423
    %v1438 = vadd.f32 %v1291, %v1423
    %v1439 = vadd.f32 %v1298, %v1423
    %v1440 = vadd.f32 %v1305, %v1423
    %v1441 = vadd.f32 %v1312, %v1423
    %v1442 = vadd.f32 %v1319, %v1423
    %v1443 = vadd.f32 %v1326, %v1423
    %v1444 = vadd.f32 %v1333, %v1423
    %v1445 = vadd.f32 %v1340, %v1423
    %v1446 = vadd.f32 %v1347, %v1423
    %v1447 = vadd.f32 %v1354, %v1423
    %v1448 = vadd.f32 %v1361, %v1423
    %v1449 = vadd.f32 %v1368, %v1423
    %v1450 = vadd.f32 %v1375, %v1423
    %v1451 = vadd.f32 %v1382, %v1423
    %v1452 = vadd.f32 %v1389, %v1423
    %v1453 = vadd.f32 %v1396, %v1423
    %v1454 = vadd.f32 %v1403, %v1423
    %v1455 = vadd.f32 %v1410, %v1423
    %v1456 = vadd.f32 %v1417, %v1423
    %v1457 = vmax.f32 %v1425, 0.0
    %v1458 = vmax.f32 %v1426, 0.0
    %v1459 = vmax.f32 %v1427, 0.0
    %v1460 = vmax.f32 %v1428, 0.0
    %v1461 = vmax.f32 %v1429, 0.0
    %v1462 = vmax.f32 %v1430, 0.0
    %v1463 = vmax.f32 %v1431, 0.0
    %v1464 = vmax.f32 %v1432, 0.0
    %v1465 = vmax.f32 %v1433, 0.0
    %v1466 = vmax.f32 %v1434, 0.0
    %v1467 = vmax.f32 %v1435, 0.0
    %v1468 = vmax.f32 %v1436, 0.0
    %v1469 = vmax.f32 %v1437, 0.0
    %v1470 = vmax.f32 %v1438, 0.0
    %v1471 = vmax.f32 %v1439, 0.0
    %v1472 = vmax.f32 %v1440, 0.0
    %v1473 = vmax.f32 %v1441, 0.0
    %v1474 = vmax.f32 %v1442, 0.0
    %v1475 = vmax.f32 %v1443, 0.0
    %v1476 = vmax.f32 %v1444, 0.0
    %v1477 = vmax.f32 %v1445, 0.0
    %v1478 = vmax.f32 %v1446, 0.0
    %v1479 = vmax.f32 %v1447, 0.0
    %v1480 = vmax.f32 %v1448, 0.0
    %v1481 = vmax.f32 %v1449, 0.0
    %v1482 = vmax.f32 %v1450, 0.0
    %v1483 = vmax.f32 %v1451, 0.0
    %v1484 = vmax.f32 %v1452, 0.0
    %v1485 = vmax.f32 %v1453, 0.0
    %v1486 = vmax.f32 %v1454, 0.0
    %v1487 = vmax.f32 %v1455, 0.0
    %v1488 = vmax.f32 %v1456, 0.0
    %v1489 = vpack.c.bf16 %v1457, %v1457
    %v1490 = vpack.c.bf16 %v1458, %v1458
    %v1491 = vpack.c.bf16 %v1459, %v1459
    %v1492 = vpack.c.bf16 %v1460, %v1460
    %v1493 = vpack.c.bf16 %v1461, %v1461
    %v1494 = vpack.c.bf16 %v1462, %v1462
    %v1495 = vpack.c.bf16 %v1463, %v1463
    %v1496 = vpack.c.bf16 %v1464, %v1464
    %v1497 = vpack.c.bf16 %v1465, %v1465
    %v1498 = vpack.c.bf16 %v1466, %v1466
    %v1499 = vpack.c.bf16 %v1467, %v1467
    %v1500 = vpack.c.bf16 %v1468, %v1468
    %v1501 = vpack.c.bf16 %v1469, %v1469
    %v1502 = vpack.c.bf16 %v1470, %v1470
    %v1503 = vpack.c.bf16 %v1471, %v1471
    %v1504 = vpack.c.bf16 %v1472, %v1472
    %v1505 = vpack.c.bf16 %v1473, %v1473
    %v1506 = vpack.c.bf16 %v1474, %v1474
    %v1507 = vpack.c.bf16 %v1475, %v1475
    %v1508 = vpack.c.bf16 %v1476, %v1476
    %v1509 = vpack.c.bf16 %v1477, %v1477
    %v1510 = vpack.c.bf16 %v1478, %v1478
    %v1511 = vpack.c.bf16 %v1479, %v1479
    %v1512 = vpack.c.bf16 %v1480, %v1480
    %v1513 = vpack.c.bf16 %v1481, %v1481
    %v1514 = vpack.c.bf16 %v1482, %v1482
    %v1515 = vpack.c.bf16 %v1483, %v1483
    %v1516 = vpack.c.bf16 %v1484, %v1484
    %v1517 = vpack.c.bf16 %v1485, %v1485
    %v1518 = vpack.c.bf16 %v1486, %v1486
    %v1519 = vpack.c.bf16 %v1487, %v1487
    %v1520 = vpack.c.bf16 %v1488, %v1488
    %v1521 = vld [vmem:[%s3] sm:$0xff]
    %v1522 = vld [vmem:[%s3 + $0x8] sm:$0xff]
    %v1523 = vld [vmem:[%s3 + $0x10] sm:$0xff]
    %v1524 = vld [vmem:[%s3 + $0x18] sm:$0xff]
    %v1525 = vld [vmem:[%s3 + $0x20] sm:$0xff]
    %v1526 = vld [vmem:[%s3 + $0x28] sm:$0xff]
    %v1527 = vld [vmem:[%s3 + $0x30] sm:$0xff]
    %v1528 = vld [vmem:[%s3 + $0x38] sm:$0xff]
    %v1529 = vld [vmem:[%s3 + $0x40] sm:$0xff]
    %v1530 = vld [vmem:[%s3 + $0x48] sm:$0xff]
    %v1531 = vld [vmem:[%s3 + $0x50] sm:$0xff]
    %v1532 = vld [vmem:[%s3 + $0x58] sm:$0xff]
    %v1533 = vld [vmem:[%s3 + $0x60] sm:$0xff]
    %v1534 = vld [vmem:[%s3 + $0x68] sm:$0xff]
    %v1535 = vld [vmem:[%s3 + $0x70] sm:$0xff]
    %v1536 = vld [vmem:[%s3 + $0x78] sm:$0xff]
    %v1569 = vunpack.c.l.b16 %v1489
    %v1570 = vunpack.c.l.b16 %v1490
    %v1571 = vunpack.c.l.b16 %v1491
    %v1572 = vunpack.c.l.b16 %v1492
    %v1573 = vunpack.c.l.b16 %v1493
    %v1574 = vunpack.c.l.b16 %v1494
    %v1575 = vunpack.c.l.b16 %v1495
    %v1576 = vunpack.c.l.b16 %v1496
    %v1577 = vunpack.c.l.b16 %v1497
    %v1578 = vunpack.c.l.b16 %v1498
    %v1579 = vunpack.c.l.b16 %v1499
    %v1580 = vunpack.c.l.b16 %v1500
    %v1581 = vunpack.c.l.b16 %v1501
    %v1582 = vunpack.c.l.b16 %v1502
    %v1583 = vunpack.c.l.b16 %v1503
    %v1584 = vunpack.c.l.b16 %v1504
    %v1585 = vunpack.c.l.b16 %v1505
    %v1586 = vunpack.c.l.b16 %v1506
    %v1587 = vunpack.c.l.b16 %v1507
    %v1588 = vunpack.c.l.b16 %v1508
    %v1589 = vunpack.c.l.b16 %v1509
    %v1590 = vunpack.c.l.b16 %v1510
    %v1591 = vunpack.c.l.b16 %v1511
    %v1592 = vunpack.c.l.b16 %v1512
    %v1593 = vunpack.c.l.b16 %v1513
    %v1594 = vunpack.c.l.b16 %v1514
    %v1595 = vunpack.c.l.b16 %v1515
    %v1596 = vunpack.c.l.b16 %v1516
    %v1597 = vunpack.c.l.b16 %v1517
    %v1598 = vunpack.c.l.b16 %v1518
    %v1599 = vunpack.c.l.b16 %v1519
    %v1600 = vunpack.c.l.b16 %v1520
    %v1601 = vrot.slane %v1570, 7
    %vm1602 = vcmask 1041409
    %v1603 = vsel %vm1602, %v1601, %v1569
    %v1604 = vrot.slane %v1571, 6
    %vm1605 = vcmask 1042434
    %v1606 = vsel %vm1605, %v1604, %v1603
    %v1607 = vrot.slane %v1572, 5
    %vm1608 = vcmask 1043459
    %v1609 = vsel %vm1608, %v1607, %v1606
    %v1610 = vrot.slane %v1573, 4
    %vm1611 = vcmask 1044484
    %v1612 = vsel %vm1611, %v1610, %v1609
    %v1613 = vrot.slane %v1574, 3
    %vm1614 = vcmask 1045509
    %v1615 = vsel %vm1614, %v1613, %v1612
    %v1616 = vrot.slane %v1575, 2
    %vm1617 = vcmask 1046534
    %v1618 = vsel %vm1617, %v1616, %v1615
    %v1619 = vrot.slane %v1576, 1
    %vm1620 = vcmask 1047559
    %v1621 = vsel %vm1620, %v1619, %v1618
    %v1622 = vrot.slane %v1578, 7
    %v1623 = vsel %vm1602, %v1622, %v1577
    %v1624 = vrot.slane %v1579, 6
    %v1625 = vsel %vm1605, %v1624, %v1623
    %v1626 = vrot.slane %v1580, 5
    %v1627 = vsel %vm1608, %v1626, %v1625
    %v1628 = vrot.slane %v1581, 4
    %v1629 = vsel %vm1611, %v1628, %v1627
    %v1630 = vrot.slane %v1582, 3
    %v1631 = vsel %vm1614, %v1630, %v1629
    %v1632 = vrot.slane %v1583, 2
    %v1633 = vsel %vm1617, %v1632, %v1631
    %v1634 = vrot.slane %v1584, 1
    %v1635 = vsel %vm1620, %v1634, %v1633
    %v1636 = vrot.slane %v1586, 7
    %v1637 = vsel %vm1602, %v1636, %v1585
    %v1638 = vrot.slane %v1587, 6
    %v1639 = vsel %vm1605, %v1638, %v1637
    %v1640 = vrot.slane %v1588, 5
    %v1641 = vsel %vm1608, %v1640, %v1639
    %v1642 = vrot.slane %v1589, 4
    %v1643 = vsel %vm1611, %v1642, %v1641
    %v1644 = vrot.slane %v1590, 3
    %v1645 = vsel %vm1614, %v1644, %v1643
    %v1646 = vrot.slane %v1591, 2
    %v1647 = vsel %vm1617, %v1646, %v1645
    %v1648 = vrot.slane %v1592, 1
    %v1649 = vsel %vm1620, %v1648, %v1647
    %v1650 = vrot.slane %v1594, 7
    %v1651 = vsel %vm1602, %v1650, %v1593
    %v1652 = vrot.slane %v1595, 6
    %v1653 = vsel %vm1605, %v1652, %v1651
    %v1654 = vrot.slane %v1596, 5
    %v1655 = vsel %vm1608, %v1654, %v1653
    %v1656 = vrot.slane %v1597, 4
    %v1657 = vsel %vm1611, %v1656, %v1655
    %v1658 = vrot.slane %v1598, 3
    %v1659 = vsel %vm1614, %v1658, %v1657
    %v1660 = vrot.slane %v1599, 2
    %v1661 = vsel %vm1617, %v1660, %v1659
    %v1662 = vrot.slane %v1600, 1
    %v1663 = vsel %vm1620, %v1662, %v1661
    %v1664 = vpack.c.b16 %v1635, %v1621
    %v1665 = vpack.c.b16 %v1663, %v1649
    %v1684 = vunpack.c.l.b16 %v1521
    %v1685 = vunpack.c.h.b16 %v1521
    %v1686 = vunpack.c.l.b16 %v1522
    %v1687 = vunpack.c.h.b16 %v1522
    %v1688 = vunpack.c.l.b16 %v1523
    %v1689 = vunpack.c.h.b16 %v1523
    %v1690 = vunpack.c.l.b16 %v1524
    %v1691 = vunpack.c.h.b16 %v1524
    %v1692 = vunpack.c.l.b16 %v1525
    %v1693 = vunpack.c.h.b16 %v1525
    %v1694 = vunpack.c.l.b16 %v1526
    %v1695 = vunpack.c.h.b16 %v1526
    %v1696 = vunpack.c.l.b16 %v1527
    %v1697 = vunpack.c.h.b16 %v1527
    %v1698 = vunpack.c.l.b16 %v1528
    %v1699 = vunpack.c.h.b16 %v1528
    %v1700 = vunpack.c.l.b16 %v1529
    %v1701 = vunpack.c.h.b16 %v1529
    %v1702 = vunpack.c.l.b16 %v1530
    %v1703 = vunpack.c.h.b16 %v1530
    %v1704 = vunpack.c.l.b16 %v1531
    %v1705 = vunpack.c.h.b16 %v1531
    %v1706 = vunpack.c.l.b16 %v1532
    %v1707 = vunpack.c.h.b16 %v1532
    %v1708 = vunpack.c.l.b16 %v1533
    %v1709 = vunpack.c.h.b16 %v1533
    %v1710 = vunpack.c.l.b16 %v1534
    %v1711 = vunpack.c.h.b16 %v1534
    %v1712 = vunpack.c.l.b16 %v1535
    %v1713 = vunpack.c.h.b16 %v1535
    %v1714 = vunpack.c.l.b16 %v1536
    %v1715 = vunpack.c.h.b16 %v1536
    %v1716 = vpack.c.b16 %v1686, %v1684
    %v1717 = vpack.c.b16 %v1687, %v1685
    %v1718 = vpack.c.b16 %v1690, %v1688
    %v1719 = vpack.c.b16 %v1691, %v1689
    %v1720 = vpack.c.b16 %v1694, %v1692
    %v1721 = vpack.c.b16 %v1695, %v1693
    %v1722 = vpack.c.b16 %v1698, %v1696
    %v1723 = vpack.c.b16 %v1699, %v1697
    %v1724 = vpack.c.b16 %v1702, %v1700
    %v1725 = vpack.c.b16 %v1703, %v1701
    %v1726 = vpack.c.b16 %v1706, %v1704
    %v1727 = vpack.c.b16 %v1707, %v1705
    %v1728 = vpack.c.b16 %v1710, %v1708
    %v1729 = vpack.c.b16 %v1711, %v1709
    %v1730 = vpack.c.b16 %v1714, %v1712
    %v1731 = vpack.c.b16 %v1715, %v1713
    %1748 = vmatprep.subr.bf16.mxu0 %v1731
    %1749 = vmatpush1.bf16.msra.mxu0 %v1730
    %1750 = vmatprep.subr.bf16.mxu0 %v1729
    %1751 = vmatpush1.bf16.msra.mxu0 %v1728
    %1752 = vmatprep.subr.bf16.mxu0 %v1727
    %1753 = vmatpush1.bf16.msra.mxu0 %v1726
    %1754 = vmatprep.subr.bf16.mxu0 %v1725
    %1755 = vmatpush1.bf16.msra.mxu0 %v1724
    %1756 = vmatprep.subr.bf16.mxu0 %v1723
    %1757 = vmatpush1.bf16.msra.mxu0 %v1722
    %1758 = vmatprep.subr.bf16.mxu0 %v1721
    %1759 = vmatpush1.bf16.msra.mxu0 %v1720
    %1760 = vmatprep.subr.bf16.mxu0 %v1719
    %1761 = vmatpush1.bf16.msra.mxu0 %v1718
    %1762 = vmatprep.subr.bf16.mxu0 %v1717
    %1763 = vmatpush1.bf16.msra.mxu0 %v1716
    %1764 = vmatprep.subr.bf16.mxu0 0
    %1765 = vmatpush2.bf16.msra.mxu0 0
    %1766 = vmatprep.subr.bf16.mxu0 0
    %1767 = vmatpush2.bf16.msra.mxu0 0
    %1768 = vmatprep.subr.bf16.mxu0 0
    %1769 = vmatpush2.bf16.msra.mxu0 0
    %1770 = vmatprep.subr.bf16.mxu0 0
    %1771 = vmatpush2.bf16.msra.mxu0 0
    %1772 = vmatprep.subr.bf16.mxu0 0
    %1773 = vmatpush2.bf16.msra.mxu0 0
    %1774 = vmatprep.subr.bf16.mxu0 0
    %1775 = vmatpush2.bf16.msra.mxu0 0
    %1776 = vmatprep.subr.bf16.mxu0 0
    %1777 = vmatpush2.bf16.msra.mxu0 0
    %1778 = vmatprep.subr.bf16.mxu0 0
    %1779 = vmatpush2.bf16.msra.mxu0 0
    %1780 = vmatprep.mubr.bf16.mxu0 0
    %1781 = vmatmul.mubr.bf16.gmra.mxu0 %v1664
    %v1782 = vpop.f32.mrf.mxu0
    %v1783 = vadd.f32 0.0, %v1782
    %v1784 = vpop.f32.mrf.mxu0
    %v1785 = vadd.f32 0.0, %v1784
    %v1786 = vpop.f32.mrf.mxu0
    %v1787 = vpop.f32.mrf.mxu0
    %1788 = vmatprep.mubr.bf16.mxu0 0
    %1789 = vmatmul.mubr.bf16.gmra.mxu0 %v1665
    %v1790 = vpop.f32.mrf.mxu0
    %v1791 = vadd.f32 0.0, %v1790
    %v1792 = vpop.f32.mrf.mxu0
    %v1793 = vadd.f32 0.0, %v1792
    %v1794 = vpop.f32.mrf.mxu0
    %v1795 = vpop.f32.mrf.mxu0
    %1796 = vdwg.mxu0
    %s1797 = scalar_lea.vmem %s3, 128
    %v1798 = vld [vmem:[%s1797] sm:$0xff]
    %v1799 = vld [vmem:[%s1797 + $0x8] sm:$0xff]
    %v1800 = vld [vmem:[%s1797 + $0x10] sm:$0xff]
    %v1801 = vld [vmem:[%s1797 + $0x18] sm:$0xff]
    %v1802 = vld [vmem:[%s1797 + $0x20] sm:$0xff]
    %v1803 = vld [vmem:[%s1797 + $0x28] sm:$0xff]
    %v1804 = vld [vmem:[%s1797 + $0x30] sm:$0xff]
    %v1805 = vld [vmem:[%s1797 + $0x38] sm:$0xff]
    %v1806 = vld [vmem:[%s1797 + $0x40] sm:$0xff]
    %v1807 = vld [vmem:[%s1797 + $0x48] sm:$0xff]
    %v1808 = vld [vmem:[%s1797 + $0x50] sm:$0xff]
    %v1809 = vld [vmem:[%s1797 + $0x58] sm:$0xff]
    %v1810 = vld [vmem:[%s1797 + $0x60] sm:$0xff]
    %v1811 = vld [vmem:[%s1797 + $0x68] sm:$0xff]
    %v1812 = vld [vmem:[%s1797 + $0x70] sm:$0xff]
    %v1813 = vld [vmem:[%s1797 + $0x78] sm:$0xff]
    %v1830 = vunpack.c.l.b16 %v1798
    %v1831 = vunpack.c.h.b16 %v1798
    %v1832 = vunpack.c.l.b16 %v1799
    %v1833 = vunpack.c.h.b16 %v1799
    %v1834 = vunpack.c.l.b16 %v1800
    %v1835 = vunpack.c.h.b16 %v1800
    %v1836 = vunpack.c.l.b16 %v1801
    %v1837 = vunpack.c.h.b16 %v1801
    %v1838 = vunpack.c.l.b16 %v1802
    %v1839 = vunpack.c.h.b16 %v1802
    %v1840 = vunpack.c.l.b16 %v1803
    %v1841 = vunpack.c.h.b16 %v1803
    %v1842 = vunpack.c.l.b16 %v1804
    %v1843 = vunpack.c.h.b16 %v1804
    %v1844 = vunpack.c.l.b16 %v1805
    %v1845 = vunpack.c.h.b16 %v1805
    %v1846 = vunpack.c.l.b16 %v1806
    %v1847 = vunpack.c.h.b16 %v1806
    %v1848 = vunpack.c.l.b16 %v1807
    %v1849 = vunpack.c.h.b16 %v1807
    %v1850 = vunpack.c.l.b16 %v1808
    %v1851 = vunpack.c.h.b16 %v1808
    %v1852 = vunpack.c.l.b16 %v1809
    %v1853 = vunpack.c.h.b16 %v1809
    %v1854 = vunpack.c.l.b16 %v1810
    %v1855 = vunpack.c.h.b16 %v1810
    %v1856 = vunpack.c.l.b16 %v1811
    %v1857 = vunpack.c.h.b16 %v1811
    %v1858 = vunpack.c.l.b16 %v1812
    %v1859 = vunpack.c.h.b16 %v1812
    %v1860 = vunpack.c.l.b16 %v1813
    %v1861 = vunpack.c.h.b16 %v1813
    %v1862 = vpack.c.b16 %v1832, %v1830
    %v1863 = vpack.c.b16 %v1833, %v1831
    %v1864 = vpack.c.b16 %v1836, %v1834
    %v1865 = vpack.c.b16 %v1837, %v1835
    %v1866 = vpack.c.b16 %v1840, %v1838
    %v1867 = vpack.c.b16 %v1841, %v1839
    %v1868 = vpack.c.b16 %v1844, %v1842
    %v1869 = vpack.c.b16 %v1845, %v1843
    %v1870 = vpack.c.b16 %v1848, %v1846
    %v1871 = vpack.c.b16 %v1849, %v1847
    %v1872 = vpack.c.b16 %v1852, %v1850
    %v1873 = vpack.c.b16 %v1853, %v1851
    %v1874 = vpack.c.b16 %v1856, %v1854
    %v1875 = vpack.c.b16 %v1857, %v1855
    %v1876 = vpack.c.b16 %v1860, %v1858
    %v1877 = vpack.c.b16 %v1861, %v1859
    %1894 = vmatprep.subr.bf16.mxu0 %v1877
    %1895 = vmatpush1.bf16.msra.mxu0 %v1876
    %1896 = vmatprep.subr.bf16.mxu0 %v1875
    %1897 = vmatpush1.bf16.msra.mxu0 %v1874
    %1898 = vmatprep.subr.bf16.mxu0 %v1873
    %1899 = vmatpush1.bf16.msra.mxu0 %v1872
    %1900 = vmatprep.subr.bf16.mxu0 %v1871
    %1901 = vmatpush1.bf16.msra.mxu0 %v1870
    %1902 = vmatprep.subr.bf16.mxu0 %v1869
    %1903 = vmatpush1.bf16.msra.mxu0 %v1868
    %1904 = vmatprep.subr.bf16.mxu0 %v1867
    %1905 = vmatpush1.bf16.msra.mxu0 %v1866
    %1906 = vmatprep.subr.bf16.mxu0 %v1865
    %1907 = vmatpush1.bf16.msra.mxu0 %v1864
    %1908 = vmatprep.subr.bf16.mxu0 %v1863
    %1909 = vmatpush1.bf16.msra.mxu0 %v1862
    %1910 = vmatprep.subr.bf16.mxu0 0
    %1911 = vmatpush2.bf16.msra.mxu0 0
    %1912 = vmatprep.subr.bf16.mxu0 0
    %1913 = vmatpush2.bf16.msra.mxu0 0
    %1914 = vmatprep.subr.bf16.mxu0 0
    %1915 = vmatpush2.bf16.msra.mxu0 0
    %1916 = vmatprep.subr.bf16.mxu0 0
    %1917 = vmatpush2.bf16.msra.mxu0 0
    %1918 = vmatprep.subr.bf16.mxu0 0
    %1919 = vmatpush2.bf16.msra.mxu0 0
    %1920 = vmatprep.subr.bf16.mxu0 0
    %1921 = vmatpush2.bf16.msra.mxu0 0
    %1922 = vmatprep.subr.bf16.mxu0 0
    %1923 = vmatpush2.bf16.msra.mxu0 0
    %1924 = vmatprep.subr.bf16.mxu0 0
    %1925 = vmatpush2.bf16.msra.mxu0 0
    %1926 = vmatprep.mubr.bf16.mxu0 0
    %1927 = vmatmul.mubr.bf16.gmra.mxu0 %v1664
    %v1928 = vpop.f32.mrf.mxu0
    %v1929 = vadd.f32 0.0, %v1928
    %v1930 = vpop.f32.mrf.mxu0
    %v1931 = vadd.f32 0.0, %v1930
    %v1932 = vpop.f32.mrf.mxu0
    %v1933 = vadd.f32 0.0, %v1932
    %v1934 = vpop.f32.mrf.mxu0
    %v1935 = vadd.f32 0.0, %v1934
    %1936 = vmatprep.mubr.bf16.mxu0 0
    %1937 = vmatmul.mubr.bf16.gmra.mxu0 %v1665
    %v1938 = vpop.f32.mrf.mxu0
    %v1939 = vadd.f32 0.0, %v1938
    %v1940 = vpop.f32.mrf.mxu0
    %v1941 = vadd.f32 0.0, %v1940
    %v1942 = vpop.f32.mrf.mxu0
    %v1943 = vadd.f32 0.0, %v1942
    %v1944 = vpop.f32.mrf.mxu0
    %v1945 = vadd.f32 0.0, %v1944
    %1946 = vdwg.mxu0
    %v1955 = vrot.slane %v1929, 1
    %v1956 = vrot.slane %v1933, 1
    %v1957 = vsel %vm338, %v1955, %v1956
    %v1958 = vrot.slane %v1931, 1
    %v1959 = vrot.slane %v1935, 1
    %v1960 = vsel %vm338, %v1958, %v1959
    %v1961 = vrot.slane %v1939, 1
    %v1962 = vrot.slane %v1943, 1
    %v1963 = vsel %vm338, %v1961, %v1962
    %v1964 = vrot.slane %v1941, 1
    %v1965 = vrot.slane %v1945, 1
    %v1966 = vsel %vm338, %v1964, %v1965
    %v1971 = vadd.f32 %v1783, %v1957
    %v1972 = vadd.f32 %v1785, %v1960
    %v1973 = vadd.f32 %v1791, %v1963
    %v1974 = vadd.f32 %v1793, %v1966
    %s1975 = scalar_lea.vmem %s3, 256
    %v1976 = vld [vmem:[%s1975] sm:$0xff]
    %v1977 = vld [vmem:[%s1975 + $0x8] sm:$0xff]
    %v1978 = vld [vmem:[%s1975 + $0x10] sm:$0xff]
    %v1979 = vld [vmem:[%s1975 + $0x18] sm:$0xff]
    %v1980 = vld [vmem:[%s1975 + $0x20] sm:$0xff]
    %v1981 = vld [vmem:[%s1975 + $0x28] sm:$0xff]
    %v1982 = vld [vmem:[%s1975 + $0x30] sm:$0xff]
    %v1983 = vld [vmem:[%s1975 + $0x38] sm:$0xff]
    %v1984 = vld [vmem:[%s1975 + $0x40] sm:$0xff]
    %v1985 = vld [vmem:[%s1975 + $0x48] sm:$0xff]
    %v1986 = vld [vmem:[%s1975 + $0x50] sm:$0xff]
    %v1987 = vld [vmem:[%s1975 + $0x58] sm:$0xff]
    %v1988 = vld [vmem:[%s1975 + $0x60] sm:$0xff]
    %v1989 = vld [vmem:[%s1975 + $0x68] sm:$0xff]
    %v1990 = vld [vmem:[%s1975 + $0x70] sm:$0xff]
    %v1991 = vld [vmem:[%s1975 + $0x78] sm:$0xff]
    %v2008 = vunpack.c.l.b16 %v1976
    %v2009 = vunpack.c.h.b16 %v1976
    %v2010 = vunpack.c.l.b16 %v1977
    %v2011 = vunpack.c.h.b16 %v1977
    %v2012 = vunpack.c.l.b16 %v1978
    %v2013 = vunpack.c.h.b16 %v1978
    %v2014 = vunpack.c.l.b16 %v1979
    %v2015 = vunpack.c.h.b16 %v1979
    %v2016 = vunpack.c.l.b16 %v1980
    %v2017 = vunpack.c.h.b16 %v1980
    %v2018 = vunpack.c.l.b16 %v1981
    %v2019 = vunpack.c.h.b16 %v1981
    %v2020 = vunpack.c.l.b16 %v1982
    %v2021 = vunpack.c.h.b16 %v1982
    %v2022 = vunpack.c.l.b16 %v1983
    %v2023 = vunpack.c.h.b16 %v1983
    %v2024 = vunpack.c.l.b16 %v1984
    %v2025 = vunpack.c.h.b16 %v1984
    %v2026 = vunpack.c.l.b16 %v1985
    %v2027 = vunpack.c.h.b16 %v1985
    %v2028 = vunpack.c.l.b16 %v1986
    %v2029 = vunpack.c.h.b16 %v1986
    %v2030 = vunpack.c.l.b16 %v1987
    %v2031 = vunpack.c.h.b16 %v1987
    %v2032 = vunpack.c.l.b16 %v1988
    %v2033 = vunpack.c.h.b16 %v1988
    %v2034 = vunpack.c.l.b16 %v1989
    %v2035 = vunpack.c.h.b16 %v1989
    %v2036 = vunpack.c.l.b16 %v1990
    %v2037 = vunpack.c.h.b16 %v1990
    %v2038 = vunpack.c.l.b16 %v1991
    %v2039 = vunpack.c.h.b16 %v1991
    %v2040 = vpack.c.b16 %v2010, %v2008
    %v2041 = vpack.c.b16 %v2011, %v2009
    %v2042 = vpack.c.b16 %v2014, %v2012
    %v2043 = vpack.c.b16 %v2015, %v2013
    %v2044 = vpack.c.b16 %v2018, %v2016
    %v2045 = vpack.c.b16 %v2019, %v2017
    %v2046 = vpack.c.b16 %v2022, %v2020
    %v2047 = vpack.c.b16 %v2023, %v2021
    %v2048 = vpack.c.b16 %v2026, %v2024
    %v2049 = vpack.c.b16 %v2027, %v2025
    %v2050 = vpack.c.b16 %v2030, %v2028
    %v2051 = vpack.c.b16 %v2031, %v2029
    %v2052 = vpack.c.b16 %v2034, %v2032
    %v2053 = vpack.c.b16 %v2035, %v2033
    %v2054 = vpack.c.b16 %v2038, %v2036
    %v2055 = vpack.c.b16 %v2039, %v2037
    %2072 = vmatprep.subr.bf16.mxu0 %v2055
    %2073 = vmatpush1.bf16.msra.mxu0 %v2054
    %2074 = vmatprep.subr.bf16.mxu0 %v2053
    %2075 = vmatpush1.bf16.msra.mxu0 %v2052
    %2076 = vmatprep.subr.bf16.mxu0 %v2051
    %2077 = vmatpush1.bf16.msra.mxu0 %v2050
    %2078 = vmatprep.subr.bf16.mxu0 %v2049
    %2079 = vmatpush1.bf16.msra.mxu0 %v2048
    %2080 = vmatprep.subr.bf16.mxu0 %v2047
    %2081 = vmatpush1.bf16.msra.mxu0 %v2046
    %2082 = vmatprep.subr.bf16.mxu0 %v2045
    %2083 = vmatpush1.bf16.msra.mxu0 %v2044
    %2084 = vmatprep.subr.bf16.mxu0 %v2043
    %2085 = vmatpush1.bf16.msra.mxu0 %v2042
    %2086 = vmatprep.subr.bf16.mxu0 %v2041
    %2087 = vmatpush1.bf16.msra.mxu0 %v2040
    %2088 = vmatprep.subr.bf16.mxu0 0
    %2089 = vmatpush2.bf16.msra.mxu0 0
    %2090 = vmatprep.subr.bf16.mxu0 0
    %2091 = vmatpush2.bf16.msra.mxu0 0
    %2092 = vmatprep.subr.bf16.mxu0 0
    %2093 = vmatpush2.bf16.msra.mxu0 0
    %2094 = vmatprep.subr.bf16.mxu0 0
    %2095 = vmatpush2.bf16.msra.mxu0 0
    %2096 = vmatprep.subr.bf16.mxu0 0
    %2097 = vmatpush2.bf16.msra.mxu0 0
    %2098 = vmatprep.subr.bf16.mxu0 0
    %2099 = vmatpush2.bf16.msra.mxu0 0
    %2100 = vmatprep.subr.bf16.mxu0 0
    %2101 = vmatpush2.bf16.msra.mxu0 0
    %2102 = vmatprep.subr.bf16.mxu0 0
    %2103 = vmatpush2.bf16.msra.mxu0 0
    %2104 = vmatprep.mubr.bf16.mxu0 0
    %2105 = vmatmul.mubr.bf16.gmra.mxu0 %v1664
    %v2106 = vpop.f32.mrf.mxu0
    %v2107 = vadd.f32 0.0, %v2106
    %v2108 = vpop.f32.mrf.mxu0
    %v2109 = vadd.f32 0.0, %v2108
    %v2110 = vpop.f32.mrf.mxu0
    %v2111 = vadd.f32 0.0, %v2110
    %v2112 = vpop.f32.mrf.mxu0
    %v2113 = vadd.f32 0.0, %v2112
    %2114 = vmatprep.mubr.bf16.mxu0 0
    %2115 = vmatmul.mubr.bf16.gmra.mxu0 %v1665
    %v2116 = vpop.f32.mrf.mxu0
    %v2117 = vadd.f32 0.0, %v2116
    %v2118 = vpop.f32.mrf.mxu0
    %v2119 = vadd.f32 0.0, %v2118
    %v2120 = vpop.f32.mrf.mxu0
    %v2121 = vadd.f32 0.0, %v2120
    %v2122 = vpop.f32.mrf.mxu0
    %v2123 = vadd.f32 0.0, %v2122
    %2124 = vdwg.mxu0
    %v2133 = vrot.slane %v2107, 2
    %v2134 = vrot.slane %v2111, 2
    %v2135 = vsel %vm120, %v2133, %v2134
    %v2136 = vrot.slane %v2109, 2
    %v2137 = vrot.slane %v2113, 2
    %v2138 = vsel %vm120, %v2136, %v2137
    %v2139 = vrot.slane %v2117, 2
    %v2140 = vrot.slane %v2121, 2
    %v2141 = vsel %vm120, %v2139, %v2140
    %v2142 = vrot.slane %v2119, 2
    %v2143 = vrot.slane %v2123, 2
    %v2144 = vsel %vm120, %v2142, %v2143
    %v2149 = vadd.f32 %v1971, %v2135
    %v2150 = vadd.f32 %v1972, %v2138
    %v2151 = vadd.f32 %v1973, %v2141
    %v2152 = vadd.f32 %v1974, %v2144
    %s2153 = scalar_lea.vmem %s3, 384
    %v2154 = vld [vmem:[%s2153] sm:$0xff]
    %v2155 = vld [vmem:[%s2153 + $0x8] sm:$0xff]
    %v2156 = vld [vmem:[%s2153 + $0x10] sm:$0xff]
    %v2157 = vld [vmem:[%s2153 + $0x18] sm:$0xff]
    %v2158 = vld [vmem:[%s2153 + $0x20] sm:$0xff]
    %v2159 = vld [vmem:[%s2153 + $0x28] sm:$0xff]
    %v2160 = vld [vmem:[%s2153 + $0x30] sm:$0xff]
    %v2161 = vld [vmem:[%s2153 + $0x38] sm:$0xff]
    %v2162 = vld [vmem:[%s2153 + $0x40] sm:$0xff]
    %v2163 = vld [vmem:[%s2153 + $0x48] sm:$0xff]
    %v2164 = vld [vmem:[%s2153 + $0x50] sm:$0xff]
    %v2165 = vld [vmem:[%s2153 + $0x58] sm:$0xff]
    %v2166 = vld [vmem:[%s2153 + $0x60] sm:$0xff]
    %v2167 = vld [vmem:[%s2153 + $0x68] sm:$0xff]
    %v2168 = vld [vmem:[%s2153 + $0x70] sm:$0xff]
    %v2169 = vld [vmem:[%s2153 + $0x78] sm:$0xff]
    %v2186 = vunpack.c.l.b16 %v2154
    %v2187 = vunpack.c.h.b16 %v2154
    %v2188 = vunpack.c.l.b16 %v2155
    %v2189 = vunpack.c.h.b16 %v2155
    %v2190 = vunpack.c.l.b16 %v2156
    %v2191 = vunpack.c.h.b16 %v2156
    %v2192 = vunpack.c.l.b16 %v2157
    %v2193 = vunpack.c.h.b16 %v2157
    %v2194 = vunpack.c.l.b16 %v2158
    %v2195 = vunpack.c.h.b16 %v2158
    %v2196 = vunpack.c.l.b16 %v2159
    %v2197 = vunpack.c.h.b16 %v2159
    %v2198 = vunpack.c.l.b16 %v2160
    %v2199 = vunpack.c.h.b16 %v2160
    %v2200 = vunpack.c.l.b16 %v2161
    %v2201 = vunpack.c.h.b16 %v2161
    %v2202 = vunpack.c.l.b16 %v2162
    %v2203 = vunpack.c.h.b16 %v2162
    %v2204 = vunpack.c.l.b16 %v2163
    %v2205 = vunpack.c.h.b16 %v2163
    %v2206 = vunpack.c.l.b16 %v2164
    %v2207 = vunpack.c.h.b16 %v2164
    %v2208 = vunpack.c.l.b16 %v2165
    %v2209 = vunpack.c.h.b16 %v2165
    %v2210 = vunpack.c.l.b16 %v2166
    %v2211 = vunpack.c.h.b16 %v2166
    %v2212 = vunpack.c.l.b16 %v2167
    %v2213 = vunpack.c.h.b16 %v2167
    %v2214 = vunpack.c.l.b16 %v2168
    %v2215 = vunpack.c.h.b16 %v2168
    %v2216 = vunpack.c.l.b16 %v2169
    %v2217 = vunpack.c.h.b16 %v2169
    %v2218 = vpack.c.b16 %v2188, %v2186
    %v2219 = vpack.c.b16 %v2189, %v2187
    %v2220 = vpack.c.b16 %v2192, %v2190
    %v2221 = vpack.c.b16 %v2193, %v2191
    %v2222 = vpack.c.b16 %v2196, %v2194
    %v2223 = vpack.c.b16 %v2197, %v2195
    %v2224 = vpack.c.b16 %v2200, %v2198
    %v2225 = vpack.c.b16 %v2201, %v2199
    %v2226 = vpack.c.b16 %v2204, %v2202
    %v2227 = vpack.c.b16 %v2205, %v2203
    %v2228 = vpack.c.b16 %v2208, %v2206
    %v2229 = vpack.c.b16 %v2209, %v2207
    %v2230 = vpack.c.b16 %v2212, %v2210
    %v2231 = vpack.c.b16 %v2213, %v2211
    %v2232 = vpack.c.b16 %v2216, %v2214
    %v2233 = vpack.c.b16 %v2217, %v2215
    %2250 = vmatprep.subr.bf16.mxu0 %v2233
    %2251 = vmatpush1.bf16.msra.mxu0 %v2232
    %2252 = vmatprep.subr.bf16.mxu0 %v2231
    %2253 = vmatpush1.bf16.msra.mxu0 %v2230
    %2254 = vmatprep.subr.bf16.mxu0 %v2229
    %2255 = vmatpush1.bf16.msra.mxu0 %v2228
    %2256 = vmatprep.subr.bf16.mxu0 %v2227
    %2257 = vmatpush1.bf16.msra.mxu0 %v2226
    %2258 = vmatprep.subr.bf16.mxu0 %v2225
    %2259 = vmatpush1.bf16.msra.mxu0 %v2224
    %2260 = vmatprep.subr.bf16.mxu0 %v2223
    %2261 = vmatpush1.bf16.msra.mxu0 %v2222
    %2262 = vmatprep.subr.bf16.mxu0 %v2221
    %2263 = vmatpush1.bf16.msra.mxu0 %v2220
    %2264 = vmatprep.subr.bf16.mxu0 %v2219
    %2265 = vmatpush1.bf16.msra.mxu0 %v2218
    %2266 = vmatprep.subr.bf16.mxu0 0
    %2267 = vmatpush2.bf16.msra.mxu0 0
    %2268 = vmatprep.subr.bf16.mxu0 0
    %2269 = vmatpush2.bf16.msra.mxu0 0
    %2270 = vmatprep.subr.bf16.mxu0 0
    %2271 = vmatpush2.bf16.msra.mxu0 0
    %2272 = vmatprep.subr.bf16.mxu0 0
    %2273 = vmatpush2.bf16.msra.mxu0 0
    %2274 = vmatprep.subr.bf16.mxu0 0
    %2275 = vmatpush2.bf16.msra.mxu0 0
    %2276 = vmatprep.subr.bf16.mxu0 0
    %2277 = vmatpush2.bf16.msra.mxu0 0
    %2278 = vmatprep.subr.bf16.mxu0 0
    %2279 = vmatpush2.bf16.msra.mxu0 0
    %2280 = vmatprep.subr.bf16.mxu0 0
    %2281 = vmatpush2.bf16.msra.mxu0 0
    %2282 = vmatprep.mubr.bf16.mxu0 0
    %2283 = vmatmul.mubr.bf16.gmra.mxu0 %v1664
    %v2284 = vpop.f32.mrf.mxu0
    %v2285 = vadd.f32 0.0, %v2284
    %v2286 = vpop.f32.mrf.mxu0
    %v2287 = vadd.f32 0.0, %v2286
    %v2288 = vpop.f32.mrf.mxu0
    %v2289 = vadd.f32 0.0, %v2288
    %v2290 = vpop.f32.mrf.mxu0
    %v2291 = vadd.f32 0.0, %v2290
    %2292 = vmatprep.mubr.bf16.mxu0 0
    %2293 = vmatmul.mubr.bf16.gmra.mxu0 %v1665
    %v2294 = vpop.f32.mrf.mxu0
    %v2295 = vadd.f32 0.0, %v2294
    %v2296 = vpop.f32.mrf.mxu0
    %v2297 = vadd.f32 0.0, %v2296
    %v2298 = vpop.f32.mrf.mxu0
    %v2299 = vadd.f32 0.0, %v2298
    %v2300 = vpop.f32.mrf.mxu0
    %v2301 = vadd.f32 0.0, %v2300
    %2302 = vdwg.mxu0
    %v2311 = vrot.slane %v2285, 3
    %v2312 = vrot.slane %v2289, 3
    %v2313 = vsel %vm739, %v2311, %v2312
    %v2314 = vrot.slane %v2287, 3
    %v2315 = vrot.slane %v2291, 3
    %v2316 = vsel %vm739, %v2314, %v2315
    %v2317 = vrot.slane %v2295, 3
    %v2318 = vrot.slane %v2299, 3
    %v2319 = vsel %vm739, %v2317, %v2318
    %v2320 = vrot.slane %v2297, 3
    %v2321 = vrot.slane %v2301, 3
    %v2322 = vsel %vm739, %v2320, %v2321
    %v2327 = vadd.f32 %v2149, %v2313
    %v2328 = vadd.f32 %v2150, %v2316
    %v2329 = vadd.f32 %v2151, %v2319
    %v2330 = vadd.f32 %v2152, %v2322
    %s2331 = scalar_lea.vmem %s3, 512
    %v2332 = vld [vmem:[%s2331] sm:$0xff]
    %v2333 = vld [vmem:[%s2331 + $0x8] sm:$0xff]
    %v2334 = vld [vmem:[%s2331 + $0x10] sm:$0xff]
    %v2335 = vld [vmem:[%s2331 + $0x18] sm:$0xff]
    %v2336 = vld [vmem:[%s2331 + $0x20] sm:$0xff]
    %v2337 = vld [vmem:[%s2331 + $0x28] sm:$0xff]
    %v2338 = vld [vmem:[%s2331 + $0x30] sm:$0xff]
    %v2339 = vld [vmem:[%s2331 + $0x38] sm:$0xff]
    %v2340 = vld [vmem:[%s2331 + $0x40] sm:$0xff]
    %v2341 = vld [vmem:[%s2331 + $0x48] sm:$0xff]
    %v2342 = vld [vmem:[%s2331 + $0x50] sm:$0xff]
    %v2343 = vld [vmem:[%s2331 + $0x58] sm:$0xff]
    %v2344 = vld [vmem:[%s2331 + $0x60] sm:$0xff]
    %v2345 = vld [vmem:[%s2331 + $0x68] sm:$0xff]
    %v2346 = vld [vmem:[%s2331 + $0x70] sm:$0xff]
    %v2347 = vld [vmem:[%s2331 + $0x78] sm:$0xff]
    %v2364 = vunpack.c.l.b16 %v2332
    %v2365 = vunpack.c.h.b16 %v2332
    %v2366 = vunpack.c.l.b16 %v2333
    %v2367 = vunpack.c.h.b16 %v2333
    %v2368 = vunpack.c.l.b16 %v2334
    %v2369 = vunpack.c.h.b16 %v2334
    %v2370 = vunpack.c.l.b16 %v2335
    %v2371 = vunpack.c.h.b16 %v2335
    %v2372 = vunpack.c.l.b16 %v2336
    %v2373 = vunpack.c.h.b16 %v2336
    %v2374 = vunpack.c.l.b16 %v2337
    %v2375 = vunpack.c.h.b16 %v2337
    %v2376 = vunpack.c.l.b16 %v2338
    %v2377 = vunpack.c.h.b16 %v2338
    %v2378 = vunpack.c.l.b16 %v2339
    %v2379 = vunpack.c.h.b16 %v2339
    %v2380 = vunpack.c.l.b16 %v2340
    %v2381 = vunpack.c.h.b16 %v2340
    %v2382 = vunpack.c.l.b16 %v2341
    %v2383 = vunpack.c.h.b16 %v2341
    %v2384 = vunpack.c.l.b16 %v2342
    %v2385 = vunpack.c.h.b16 %v2342
    %v2386 = vunpack.c.l.b16 %v2343
    %v2387 = vunpack.c.h.b16 %v2343
    %v2388 = vunpack.c.l.b16 %v2344
    %v2389 = vunpack.c.h.b16 %v2344
    %v2390 = vunpack.c.l.b16 %v2345
    %v2391 = vunpack.c.h.b16 %v2345
    %v2392 = vunpack.c.l.b16 %v2346
    %v2393 = vunpack.c.h.b16 %v2346
    %v2394 = vunpack.c.l.b16 %v2347
    %v2395 = vunpack.c.h.b16 %v2347
    %v2396 = vpack.c.b16 %v2366, %v2364
    %v2397 = vpack.c.b16 %v2367, %v2365
    %v2398 = vpack.c.b16 %v2370, %v2368
    %v2399 = vpack.c.b16 %v2371, %v2369
    %v2400 = vpack.c.b16 %v2374, %v2372
    %v2401 = vpack.c.b16 %v2375, %v2373
    %v2402 = vpack.c.b16 %v2378, %v2376
    %v2403 = vpack.c.b16 %v2379, %v2377
    %v2404 = vpack.c.b16 %v2382, %v2380
    %v2405 = vpack.c.b16 %v2383, %v2381
    %v2406 = vpack.c.b16 %v2386, %v2384
    %v2407 = vpack.c.b16 %v2387, %v2385
    %v2408 = vpack.c.b16 %v2390, %v2388
    %v2409 = vpack.c.b16 %v2391, %v2389
    %v2410 = vpack.c.b16 %v2394, %v2392
    %v2411 = vpack.c.b16 %v2395, %v2393
    %2428 = vmatprep.subr.bf16.mxu0 %v2411
    %2429 = vmatpush1.bf16.msra.mxu0 %v2410
    %2430 = vmatprep.subr.bf16.mxu0 %v2409
    %2431 = vmatpush1.bf16.msra.mxu0 %v2408
    %2432 = vmatprep.subr.bf16.mxu0 %v2407
    %2433 = vmatpush1.bf16.msra.mxu0 %v2406
    %2434 = vmatprep.subr.bf16.mxu0 %v2405
    %2435 = vmatpush1.bf16.msra.mxu0 %v2404
    %2436 = vmatprep.subr.bf16.mxu0 %v2403
    %2437 = vmatpush1.bf16.msra.mxu0 %v2402
    %2438 = vmatprep.subr.bf16.mxu0 %v2401
    %2439 = vmatpush1.bf16.msra.mxu0 %v2400
    %2440 = vmatprep.subr.bf16.mxu0 %v2399
    %2441 = vmatpush1.bf16.msra.mxu0 %v2398
    %2442 = vmatprep.subr.bf16.mxu0 %v2397
    %2443 = vmatpush1.bf16.msra.mxu0 %v2396
    %2444 = vmatprep.subr.bf16.mxu0 0
    %2445 = vmatpush2.bf16.msra.mxu0 0
    %2446 = vmatprep.subr.bf16.mxu0 0
    %2447 = vmatpush2.bf16.msra.mxu0 0
    %2448 = vmatprep.subr.bf16.mxu0 0
    %2449 = vmatpush2.bf16.msra.mxu0 0
    %2450 = vmatprep.subr.bf16.mxu0 0
    %2451 = vmatpush2.bf16.msra.mxu0 0
    %2452 = vmatprep.subr.bf16.mxu0 0
    %2453 = vmatpush2.bf16.msra.mxu0 0
    %2454 = vmatprep.subr.bf16.mxu0 0
    %2455 = vmatpush2.bf16.msra.mxu0 0
    %2456 = vmatprep.subr.bf16.mxu0 0
    %2457 = vmatpush2.bf16.msra.mxu0 0
    %2458 = vmatprep.subr.bf16.mxu0 0
    %2459 = vmatpush2.bf16.msra.mxu0 0
    %2460 = vmatprep.mubr.bf16.mxu0 0
    %2461 = vmatmul.mubr.bf16.gmra.mxu0 %v1664
    %v2462 = vpop.f32.mrf.mxu0
    %v2463 = vadd.f32 0.0, %v2462
    %v2464 = vpop.f32.mrf.mxu0
    %v2465 = vadd.f32 0.0, %v2464
    %v2466 = vpop.f32.mrf.mxu0
    %v2467 = vadd.f32 0.0, %v2466
    %v2468 = vpop.f32.mrf.mxu0
    %v2469 = vadd.f32 0.0, %v2468
    %2470 = vmatprep.mubr.bf16.mxu0 0
    %2471 = vmatmul.mubr.bf16.gmra.mxu0 %v1665
    %v2472 = vpop.f32.mrf.mxu0
    %v2473 = vadd.f32 0.0, %v2472
    %v2474 = vpop.f32.mrf.mxu0
    %v2475 = vadd.f32 0.0, %v2474
    %v2476 = vpop.f32.mrf.mxu0
    %v2477 = vadd.f32 0.0, %v2476
    %v2478 = vpop.f32.mrf.mxu0
    %v2479 = vadd.f32 0.0, %v2478
    %2480 = vdwg.mxu0
    %v2489 = vrot.slane %v2463, 4
    %v2490 = vrot.slane %v2467, 4
    %v2491 = vsel %vm940, %v2489, %v2490
    %v2492 = vrot.slane %v2465, 4
    %v2493 = vrot.slane %v2469, 4
    %v2494 = vsel %vm940, %v2492, %v2493
    %v2495 = vrot.slane %v2473, 4
    %v2496 = vrot.slane %v2477, 4
    %v2497 = vsel %vm940, %v2495, %v2496
    %v2498 = vrot.slane %v2475, 4
    %v2499 = vrot.slane %v2479, 4
    %v2500 = vsel %vm940, %v2498, %v2499
    %v2505 = vadd.f32 %v2327, %v2491
    %v2506 = vadd.f32 %v2328, %v2494
    %v2507 = vadd.f32 %v2329, %v2497
    %v2508 = vadd.f32 %v2330, %v2500
    %v2509 = vmax.f32 %v2505, %v2506
    %v2510 = vmax.f32 %v2507, %v2508
    %v2513 = vrot.slane %v2509, 1
    %v2514 = vrot.slane %v2510, 1
    %v2517 = vmax.f32 %v2509, %v2513
    %v2518 = vmax.f32 %v2510, %v2514
    %v2519 = vld [vmem:[%s4] sm:$0x1]
    %v2521 = vlaneseq
    %v2522 = vshrl.u32 %v2521, 7
    %v2523 = vsub.s32 0, %v2522
    %v2524 = vrot.slane %v2519, %v2523
    %v2526 = vadd.f32 %v2517, %v2524
    %v2527 = vadd.f32 %v2518, %v2524
    %v2528 = vmax.f32 %v2526, 0.0
    %v2529 = vmax.f32 %v2527, 0.0
    %v2530 = vpack.c.bf16 %v2528, %v2528
    %v2531 = vpack.c.bf16 %v2529, %v2529
    %v2532 = vld [vmem:[%s5] sm:$0xf]
    %v2533 = vld [vmem:[%s5 + $0x4] sm:$0xf]
    %v2534 = vld [vmem:[%s5 + $0x8] sm:$0xf]
    %v2535 = vld [vmem:[%s5 + $0xc] sm:$0xf]
    %v2536 = vld [vmem:[%s5 + $0x10] sm:$0xf]
    %v2537 = vld [vmem:[%s5 + $0x14] sm:$0xf]
    %v2538 = vld [vmem:[%s5 + $0x18] sm:$0xf]
    %v2539 = vld [vmem:[%s5 + $0x1c] sm:$0xf]
    %v2540 = vld [vmem:[%s5 + $0x20] sm:$0xf]
    %v2541 = vld [vmem:[%s5 + $0x24] sm:$0xf]
    %v2542 = vld [vmem:[%s5 + $0x28] sm:$0xf]
    %v2543 = vld [vmem:[%s5 + $0x2c] sm:$0xf]
    %v2544 = vld [vmem:[%s5 + $0x30] sm:$0xf]
    %v2545 = vld [vmem:[%s5 + $0x34] sm:$0xf]
    %v2546 = vld [vmem:[%s5 + $0x38] sm:$0xf]
    %v2547 = vld [vmem:[%s5 + $0x3c] sm:$0xf]
    %s2548 = scalar_lea.vmem %s5, 64
    %v2549 = vld [vmem:[%s2548] sm:$0xf]
    %v2550 = vld [vmem:[%s2548 + $0x4] sm:$0xf]
    %v2551 = vld [vmem:[%s2548 + $0x8] sm:$0xf]
    %v2552 = vld [vmem:[%s2548 + $0xc] sm:$0xf]
    %v2553 = vld [vmem:[%s2548 + $0x10] sm:$0xf]
    %v2554 = vld [vmem:[%s2548 + $0x14] sm:$0xf]
    %v2555 = vld [vmem:[%s2548 + $0x18] sm:$0xf]
    %v2556 = vld [vmem:[%s2548 + $0x1c] sm:$0xf]
    %v2557 = vld [vmem:[%s2548 + $0x20] sm:$0xf]
    %v2558 = vld [vmem:[%s2548 + $0x24] sm:$0xf]
    %v2559 = vld [vmem:[%s2548 + $0x28] sm:$0xf]
    %v2560 = vld [vmem:[%s2548 + $0x2c] sm:$0xf]
    %v2561 = vld [vmem:[%s2548 + $0x30] sm:$0xf]
    %v2562 = vld [vmem:[%s2548 + $0x34] sm:$0xf]
    %v2563 = vld [vmem:[%s2548 + $0x38] sm:$0xf]
    %v2564 = vld [vmem:[%s2548 + $0x3c] sm:$0xf]
    %v2567 = vunpack.c.l.b16 %v2530
    %v2568 = vunpack.c.l.b16 %v2531
    %v2569 = vrot.slane %v2567, 2
    %v2570 = vrot.slane %v2568, 1
    %v2571 = vsel %vm1602, %v2570, %v2569
    %v2572 = vpack.c.b16 %v2571, %v2571
    %v2590 = vunpack.c.l.b16 %v2549
    %v2591 = vunpack.c.l.b16 %v2550
    %v2592 = vunpack.c.l.b16 %v2551
    %v2593 = vunpack.c.l.b16 %v2552
    %v2594 = vunpack.c.l.b16 %v2553
    %v2595 = vunpack.c.l.b16 %v2554
    %v2596 = vunpack.c.l.b16 %v2555
    %v2597 = vunpack.c.l.b16 %v2556
    %v2598 = vunpack.c.l.b16 %v2557
    %v2599 = vunpack.c.l.b16 %v2558
    %v2600 = vunpack.c.l.b16 %v2559
    %v2601 = vunpack.c.l.b16 %v2560
    %v2602 = vunpack.c.l.b16 %v2561
    %v2603 = vunpack.c.l.b16 %v2562
    %v2604 = vunpack.c.l.b16 %v2563
    %v2605 = vunpack.c.l.b16 %v2564
    %v2606 = vpack.c.b16 %v2591, %v2590
    %v2607 = vpack.c.b16 %v2593, %v2592
    %v2608 = vpack.c.b16 %v2595, %v2594
    %v2609 = vpack.c.b16 %v2597, %v2596
    %v2610 = vpack.c.b16 %v2599, %v2598
    %v2611 = vpack.c.b16 %v2601, %v2600
    %v2612 = vpack.c.b16 %v2603, %v2602
    %v2613 = vpack.c.b16 %v2605, %v2604
    %2622 = vmatprep.subr.bf16.mxu0 0
    %2623 = vmatpush1.bf16.msra.mxu0 %v2613
    %2624 = vmatprep.subr.bf16.mxu0 0
    %2625 = vmatpush1.bf16.msra.mxu0 %v2612
    %2626 = vmatprep.subr.bf16.mxu0 0
    %2627 = vmatpush1.bf16.msra.mxu0 %v2611
    %2628 = vmatprep.subr.bf16.mxu0 0
    %2629 = vmatpush1.bf16.msra.mxu0 %v2610
    %2630 = vmatprep.subr.bf16.mxu0 0
    %2631 = vmatpush1.bf16.msra.mxu0 %v2609
    %2632 = vmatprep.subr.bf16.mxu0 0
    %2633 = vmatpush1.bf16.msra.mxu0 %v2608
    %2634 = vmatprep.subr.bf16.mxu0 0
    %2635 = vmatpush1.bf16.msra.mxu0 %v2607
    %2636 = vmatprep.subr.bf16.mxu0 0
    %2637 = vmatpush1.bf16.msra.mxu0 %v2606
    %2638 = vmatprep.subr.bf16.mxu0 0
    %2639 = vmatpush2.bf16.msra.mxu0 0
    %2640 = vmatprep.subr.bf16.mxu0 0
    %2641 = vmatpush2.bf16.msra.mxu0 0
    %2642 = vmatprep.subr.bf16.mxu0 0
    %2643 = vmatpush2.bf16.msra.mxu0 0
    %2644 = vmatprep.subr.bf16.mxu0 0
    %2645 = vmatpush2.bf16.msra.mxu0 0
    %2646 = vmatprep.subr.bf16.mxu0 0
    %2647 = vmatpush2.bf16.msra.mxu0 0
    %2648 = vmatprep.subr.bf16.mxu0 0
    %2649 = vmatpush2.bf16.msra.mxu0 0
    %2650 = vmatprep.subr.bf16.mxu0 0
    %2651 = vmatpush2.bf16.msra.mxu0 0
    %2652 = vmatprep.subr.bf16.mxu0 0
    %2653 = vmatpush2.bf16.msra.mxu0 0
    %2654 = vmatprep.mubr.bf16.mxu0 0
    %2655 = vmatmul.mubr.bf16.gmra.mxu0 %v2572
    %v2656 = vpop.f32.mrf.mxu0
    %v2657 = vadd.f32 0.0, %v2656
    %v2658 = vpop.f32.mrf.mxu0
    %v2659 = vpop.f32.mrf.mxu0
    %v2660 = vpop.f32.mrf.mxu0
    %2661 = vdwg.mxu0
    %v2662 = vrot.slane %v2568, 7
    %v2663 = vsel %vm1602, %v2662, %v2567
    %v2664 = vpack.c.b16 %v2663, %v2663
    %v2682 = vunpack.c.l.b16 %v2532
    %v2683 = vunpack.c.l.b16 %v2533
    %v2684 = vunpack.c.l.b16 %v2534
    %v2685 = vunpack.c.l.b16 %v2535
    %v2686 = vunpack.c.l.b16 %v2536
    %v2687 = vunpack.c.l.b16 %v2537
    %v2688 = vunpack.c.l.b16 %v2538
    %v2689 = vunpack.c.l.b16 %v2539
    %v2690 = vunpack.c.l.b16 %v2540
    %v2691 = vunpack.c.l.b16 %v2541
    %v2692 = vunpack.c.l.b16 %v2542
    %v2693 = vunpack.c.l.b16 %v2543
    %v2694 = vunpack.c.l.b16 %v2544
    %v2695 = vunpack.c.l.b16 %v2545
    %v2696 = vunpack.c.l.b16 %v2546
    %v2697 = vunpack.c.l.b16 %v2547
    %v2698 = vpack.c.b16 %v2683, %v2682
    %v2699 = vpack.c.b16 %v2685, %v2684
    %v2700 = vpack.c.b16 %v2687, %v2686
    %v2701 = vpack.c.b16 %v2689, %v2688
    %v2702 = vpack.c.b16 %v2691, %v2690
    %v2703 = vpack.c.b16 %v2693, %v2692
    %v2704 = vpack.c.b16 %v2695, %v2694
    %v2705 = vpack.c.b16 %v2697, %v2696
    %2714 = vmatprep.subr.bf16.mxu0 0
    %2715 = vmatpush1.bf16.msra.mxu0 %v2705
    %2716 = vmatprep.subr.bf16.mxu0 0
    %2717 = vmatpush1.bf16.msra.mxu0 %v2704
    %2718 = vmatprep.subr.bf16.mxu0 0
    %2719 = vmatpush1.bf16.msra.mxu0 %v2703
    %2720 = vmatprep.subr.bf16.mxu0 0
    %2721 = vmatpush1.bf16.msra.mxu0 %v2702
    %2722 = vmatprep.subr.bf16.mxu0 0
    %2723 = vmatpush1.bf16.msra.mxu0 %v2701
    %2724 = vmatprep.subr.bf16.mxu0 0
    %2725 = vmatpush1.bf16.msra.mxu0 %v2700
    %2726 = vmatprep.subr.bf16.mxu0 0
    %2727 = vmatpush1.bf16.msra.mxu0 %v2699
    %2728 = vmatprep.subr.bf16.mxu0 0
    %2729 = vmatpush1.bf16.msra.mxu0 %v2698
    %2730 = vmatprep.subr.bf16.mxu0 0
    %2731 = vmatpush2.bf16.msra.mxu0 0
    %2732 = vmatprep.subr.bf16.mxu0 0
    %2733 = vmatpush2.bf16.msra.mxu0 0
    %2734 = vmatprep.subr.bf16.mxu0 0
    %2735 = vmatpush2.bf16.msra.mxu0 0
    %2736 = vmatprep.subr.bf16.mxu0 0
    %2737 = vmatpush2.bf16.msra.mxu0 0
    %2738 = vmatprep.subr.bf16.mxu0 0
    %2739 = vmatpush2.bf16.msra.mxu0 0
    %2740 = vmatprep.subr.bf16.mxu0 0
    %2741 = vmatpush2.bf16.msra.mxu0 0
    %2742 = vmatprep.subr.bf16.mxu0 0
    %2743 = vmatpush2.bf16.msra.mxu0 0
    %2744 = vmatprep.subr.bf16.mxu0 0
    %2745 = vmatpush2.bf16.msra.mxu0 0
    %2746 = vmatprep.mubr.bf16.mxu0 0
    %2747 = vmatmul.mubr.bf16.gmra.mxu0 %v2664
    %v2748 = vpop.f32.mrf.mxu0
    %v2749 = vadd.f32 %v2657, %v2748
    %v2750 = vpop.f32.mrf.mxu0
    %v2751 = vpop.f32.mrf.mxu0
    %v2752 = vpop.f32.mrf.mxu0
    %2753 = vdwg.mxu0
    %s2754 = scalar_lea.vmem %s5, 128
    %v2755 = vld [vmem:[%s2754] sm:$0xf]
    %v2756 = vld [vmem:[%s2754 + $0x4] sm:$0xf]
    %v2757 = vld [vmem:[%s2754 + $0x8] sm:$0xf]
    %v2758 = vld [vmem:[%s2754 + $0xc] sm:$0xf]
    %v2759 = vld [vmem:[%s2754 + $0x10] sm:$0xf]
    %v2760 = vld [vmem:[%s2754 + $0x14] sm:$0xf]
    %v2761 = vld [vmem:[%s2754 + $0x18] sm:$0xf]
    %v2762 = vld [vmem:[%s2754 + $0x1c] sm:$0xf]
    %v2763 = vld [vmem:[%s2754 + $0x20] sm:$0xf]
    %v2764 = vld [vmem:[%s2754 + $0x24] sm:$0xf]
    %v2765 = vld [vmem:[%s2754 + $0x28] sm:$0xf]
    %v2766 = vld [vmem:[%s2754 + $0x2c] sm:$0xf]
    %v2767 = vld [vmem:[%s2754 + $0x30] sm:$0xf]
    %v2768 = vld [vmem:[%s2754 + $0x34] sm:$0xf]
    %v2769 = vld [vmem:[%s2754 + $0x38] sm:$0xf]
    %v2770 = vld [vmem:[%s2754 + $0x3c] sm:$0xf]
    %v2771 = vrot.slane %v2567, 4
    %v2772 = vrot.slane %v2568, 3
    %v2773 = vsel %vm1602, %v2772, %v2771
    %v2774 = vpack.c.b16 %v2773, %v2773
    %v2792 = vunpack.c.l.b16 %v2755
    %v2793 = vunpack.c.l.b16 %v2756
    %v2794 = vunpack.c.l.b16 %v2757
    %v2795 = vunpack.c.l.b16 %v2758
    %v2796 = vunpack.c.l.b16 %v2759
    %v2797 = vunpack.c.l.b16 %v2760
    %v2798 = vunpack.c.l.b16 %v2761
    %v2799 = vunpack.c.l.b16 %v2762
    %v2800 = vunpack.c.l.b16 %v2763
    %v2801 = vunpack.c.l.b16 %v2764
    %v2802 = vunpack.c.l.b16 %v2765
    %v2803 = vunpack.c.l.b16 %v2766
    %v2804 = vunpack.c.l.b16 %v2767
    %v2805 = vunpack.c.l.b16 %v2768
    %v2806 = vunpack.c.l.b16 %v2769
    %v2807 = vunpack.c.l.b16 %v2770
    %v2808 = vpack.c.b16 %v2793, %v2792
    %v2809 = vpack.c.b16 %v2795, %v2794
    %v2810 = vpack.c.b16 %v2797, %v2796
    %v2811 = vpack.c.b16 %v2799, %v2798
    %v2812 = vpack.c.b16 %v2801, %v2800
    %v2813 = vpack.c.b16 %v2803, %v2802
    %v2814 = vpack.c.b16 %v2805, %v2804
    %v2815 = vpack.c.b16 %v2807, %v2806
    %2824 = vmatprep.subr.bf16.mxu0 0
    %2825 = vmatpush1.bf16.msra.mxu0 %v2815
    %2826 = vmatprep.subr.bf16.mxu0 0
    %2827 = vmatpush1.bf16.msra.mxu0 %v2814
    %2828 = vmatprep.subr.bf16.mxu0 0
    %2829 = vmatpush1.bf16.msra.mxu0 %v2813
    %2830 = vmatprep.subr.bf16.mxu0 0
    %2831 = vmatpush1.bf16.msra.mxu0 %v2812
    %2832 = vmatprep.subr.bf16.mxu0 0
    %2833 = vmatpush1.bf16.msra.mxu0 %v2811
    %2834 = vmatprep.subr.bf16.mxu0 0
    %2835 = vmatpush1.bf16.msra.mxu0 %v2810
    %2836 = vmatprep.subr.bf16.mxu0 0
    %2837 = vmatpush1.bf16.msra.mxu0 %v2809
    %2838 = vmatprep.subr.bf16.mxu0 0
    %2839 = vmatpush1.bf16.msra.mxu0 %v2808
    %2840 = vmatprep.subr.bf16.mxu0 0
    %2841 = vmatpush2.bf16.msra.mxu0 0
    %2842 = vmatprep.subr.bf16.mxu0 0
    %2843 = vmatpush2.bf16.msra.mxu0 0
    %2844 = vmatprep.subr.bf16.mxu0 0
    %2845 = vmatpush2.bf16.msra.mxu0 0
    %2846 = vmatprep.subr.bf16.mxu0 0
    %2847 = vmatpush2.bf16.msra.mxu0 0
    %2848 = vmatprep.subr.bf16.mxu0 0
    %2849 = vmatpush2.bf16.msra.mxu0 0
    %2850 = vmatprep.subr.bf16.mxu0 0
    %2851 = vmatpush2.bf16.msra.mxu0 0
    %2852 = vmatprep.subr.bf16.mxu0 0
    %2853 = vmatpush2.bf16.msra.mxu0 0
    %2854 = vmatprep.subr.bf16.mxu0 0
    %2855 = vmatpush2.bf16.msra.mxu0 0
    %2856 = vmatprep.mubr.bf16.mxu0 0
    %2857 = vmatmul.mubr.bf16.gmra.mxu0 %v2774
    %v2858 = vpop.f32.mrf.mxu0
    %v2859 = vadd.f32 0.0, %v2858
    %v2860 = vpop.f32.mrf.mxu0
    %v2861 = vpop.f32.mrf.mxu0
    %v2862 = vpop.f32.mrf.mxu0
    %2863 = vdwg.mxu0
    %v2864 = vadd.f32 %v2749, %v2859
    %s2865 = scalar_lea.vmem %s5, 192
    %v2866 = vld [vmem:[%s2865] sm:$0xf]
    %v2867 = vld [vmem:[%s2865 + $0x4] sm:$0xf]
    %v2868 = vld [vmem:[%s2865 + $0x8] sm:$0xf]
    %v2869 = vld [vmem:[%s2865 + $0xc] sm:$0xf]
    %v2870 = vld [vmem:[%s2865 + $0x10] sm:$0xf]
    %v2871 = vld [vmem:[%s2865 + $0x14] sm:$0xf]
    %v2872 = vld [vmem:[%s2865 + $0x18] sm:$0xf]
    %v2873 = vld [vmem:[%s2865 + $0x1c] sm:$0xf]
    %v2874 = vld [vmem:[%s2865 + $0x20] sm:$0xf]
    %v2875 = vld [vmem:[%s2865 + $0x24] sm:$0xf]
    %v2876 = vld [vmem:[%s2865 + $0x28] sm:$0xf]
    %v2877 = vld [vmem:[%s2865 + $0x2c] sm:$0xf]
    %v2878 = vld [vmem:[%s2865 + $0x30] sm:$0xf]
    %v2879 = vld [vmem:[%s2865 + $0x34] sm:$0xf]
    %v2880 = vld [vmem:[%s2865 + $0x38] sm:$0xf]
    %v2881 = vld [vmem:[%s2865 + $0x3c] sm:$0xf]
    %v2882 = vrot.slane %v2567, 6
    %v2883 = vrot.slane %v2568, 5
    %v2884 = vsel %vm1602, %v2883, %v2882
    %v2885 = vpack.c.b16 %v2884, %v2884
    %v2903 = vunpack.c.l.b16 %v2866
    %v2904 = vunpack.c.l.b16 %v2867
    %v2905 = vunpack.c.l.b16 %v2868
    %v2906 = vunpack.c.l.b16 %v2869
    %v2907 = vunpack.c.l.b16 %v2870
    %v2908 = vunpack.c.l.b16 %v2871
    %v2909 = vunpack.c.l.b16 %v2872
    %v2910 = vunpack.c.l.b16 %v2873
    %v2911 = vunpack.c.l.b16 %v2874
    %v2912 = vunpack.c.l.b16 %v2875
    %v2913 = vunpack.c.l.b16 %v2876
    %v2914 = vunpack.c.l.b16 %v2877
    %v2915 = vunpack.c.l.b16 %v2878
    %v2916 = vunpack.c.l.b16 %v2879
    %v2917 = vunpack.c.l.b16 %v2880
    %v2918 = vunpack.c.l.b16 %v2881
    %v2919 = vpack.c.b16 %v2904, %v2903
    %v2920 = vpack.c.b16 %v2906, %v2905
    %v2921 = vpack.c.b16 %v2908, %v2907
    %v2922 = vpack.c.b16 %v2910, %v2909
    %v2923 = vpack.c.b16 %v2912, %v2911
    %v2924 = vpack.c.b16 %v2914, %v2913
    %v2925 = vpack.c.b16 %v2916, %v2915
    %v2926 = vpack.c.b16 %v2918, %v2917
    %2935 = vmatprep.subr.bf16.mxu0 0
    %2936 = vmatpush1.bf16.msra.mxu0 %v2926
    %2937 = vmatprep.subr.bf16.mxu0 0
    %2938 = vmatpush1.bf16.msra.mxu0 %v2925
    %2939 = vmatprep.subr.bf16.mxu0 0
    %2940 = vmatpush1.bf16.msra.mxu0 %v2924
    %2941 = vmatprep.subr.bf16.mxu0 0
    %2942 = vmatpush1.bf16.msra.mxu0 %v2923
    %2943 = vmatprep.subr.bf16.mxu0 0
    %2944 = vmatpush1.bf16.msra.mxu0 %v2922
    %2945 = vmatprep.subr.bf16.mxu0 0
    %2946 = vmatpush1.bf16.msra.mxu0 %v2921
    %2947 = vmatprep.subr.bf16.mxu0 0
    %2948 = vmatpush1.bf16.msra.mxu0 %v2920
    %2949 = vmatprep.subr.bf16.mxu0 0
    %2950 = vmatpush1.bf16.msra.mxu0 %v2919
    %2951 = vmatprep.subr.bf16.mxu0 0
    %2952 = vmatpush2.bf16.msra.mxu0 0
    %2953 = vmatprep.subr.bf16.mxu0 0
    %2954 = vmatpush2.bf16.msra.mxu0 0
    %2955 = vmatprep.subr.bf16.mxu0 0
    %2956 = vmatpush2.bf16.msra.mxu0 0
    %2957 = vmatprep.subr.bf16.mxu0 0
    %2958 = vmatpush2.bf16.msra.mxu0 0
    %2959 = vmatprep.subr.bf16.mxu0 0
    %2960 = vmatpush2.bf16.msra.mxu0 0
    %2961 = vmatprep.subr.bf16.mxu0 0
    %2962 = vmatpush2.bf16.msra.mxu0 0
    %2963 = vmatprep.subr.bf16.mxu0 0
    %2964 = vmatpush2.bf16.msra.mxu0 0
    %2965 = vmatprep.subr.bf16.mxu0 0
    %2966 = vmatpush2.bf16.msra.mxu0 0
    %2967 = vmatprep.mubr.bf16.mxu0 0
    %2968 = vmatmul.mubr.bf16.gmra.mxu0 %v2885
    %v2969 = vpop.f32.mrf.mxu0
    %v2970 = vadd.f32 0.0, %v2969
    %v2971 = vpop.f32.mrf.mxu0
    %v2972 = vpop.f32.mrf.mxu0
    %v2973 = vpop.f32.mrf.mxu0
    %2974 = vdwg.mxu0
    %v2975 = vadd.f32 %v2864, %v2970
    %v2976 = vld [vmem:[%s6] sm:$0x1]
    %v2978 = vlaneseq
    %v2979 = vshrl.u32 %v2978, 7
    %v2980 = vsub.s32 0, %v2979
    %v2981 = vrot.slane %v2976, %v2980
    %v2983 = vadd.f32 %v2975, %v2981
    %v2984 = vmax.f32 %v2983, 0.0
    %v2985 = vpack.c.bf16 %v2984, %v2984
    %v2986 = vld [vmem:[%s7] sm:$0xf]
    %v2987 = vld [vmem:[%s7 + $0x4] sm:$0xf]
    %v2988 = vld [vmem:[%s7 + $0x8] sm:$0xf]
    %v2989 = vld [vmem:[%s7 + $0xc] sm:$0xf]
    %v2990 = vld [vmem:[%s7 + $0x10] sm:$0xf]
    %v2991 = vld [vmem:[%s7 + $0x14] sm:$0xf]
    %v2992 = vld [vmem:[%s7 + $0x18] sm:$0x1]
    %v2993 = vld [vmem:[%s8] sm:$0x1]
    %v2995 = vlaneseq
    %v2996 = vshrl.u32 %v2995, 7
    %v2997 = vsub.s32 0, %v2996
    %v2998 = vrot.slane %v2993, %v2997
    %v3007 = vunpack.c.l.b16 %v2986
    %v3008 = vunpack.c.l.b16 %v2987
    %v3009 = vunpack.c.l.b16 %v2988
    %v3010 = vunpack.c.l.b16 %v2989
    %v3011 = vunpack.c.l.b16 %v2990
    %v3012 = vunpack.c.l.b16 %v2991
    %v3013 = vunpack.c.l.b16 %v2992
    %v3014 = vpack.c.b16 %v3008, %v3007
    %v3015 = vpack.c.b16 %v3010, %v3009
    %v3016 = vpack.c.b16 %v3012, %v3011
    %v3017 = vpack.c.b16 %v3013, %v3013
    %vm3021 = vcmask 408576
    %v3023 = vsel %vm3021, %v2985, 0
    %vm3025 = vcmask 1040384
    %v3027 = vsel %vm3025, %v3017, 0
    %3029 = vmatprep.subr.bf16.mxu0 0
    %3030 = vmatpush1.bf16.msra.mxu0 0
    %3031 = vmatprep.subr.bf16.mxu0 0
    %3032 = vmatpush1.bf16.msra.mxu0 0
    %3033 = vmatprep.subr.bf16.mxu0 0
    %3034 = vmatpush1.bf16.msra.mxu0 0
    %3035 = vmatprep.subr.bf16.mxu0 0
    %3036 = vmatpush1.bf16.msra.mxu0 0
    %3037 = vmatprep.subr.bf16.mxu0 0
    %3038 = vmatpush1.bf16.msra.mxu0 %v3027
    %3039 = vmatprep.subr.bf16.mxu0 0
    %3040 = vmatpush1.bf16.msra.mxu0 %v3016
    %3041 = vmatprep.subr.bf16.mxu0 0
    %3042 = vmatpush1.bf16.msra.mxu0 %v3015
    %3043 = vmatprep.subr.bf16.mxu0 0
    %3044 = vmatpush1.bf16.msra.mxu0 %v3014
    %3045 = vmatprep.subr.bf16.mxu0 0
    %3046 = vmatpush2.bf16.msra.mxu0 0
    %3047 = vmatprep.subr.bf16.mxu0 0
    %3048 = vmatpush2.bf16.msra.mxu0 0
    %3049 = vmatprep.subr.bf16.mxu0 0
    %3050 = vmatpush2.bf16.msra.mxu0 0
    %3051 = vmatprep.subr.bf16.mxu0 0
    %3052 = vmatpush2.bf16.msra.mxu0 0
    %3053 = vmatprep.subr.bf16.mxu0 0
    %3054 = vmatpush2.bf16.msra.mxu0 0
    %3055 = vmatprep.subr.bf16.mxu0 0
    %3056 = vmatpush2.bf16.msra.mxu0 0
    %3057 = vmatprep.subr.bf16.mxu0 0
    %3058 = vmatpush2.bf16.msra.mxu0 0
    %3059 = vmatprep.subr.bf16.mxu0 0
    %3060 = vmatpush2.bf16.msra.mxu0 0
    %3061 = vmatprep.mubr.bf16.mxu0 0
    %3062 = vmatmul.mubr.bf16.gmra.mxu0 %v3023
    %v3063 = vpop.f32.mrf.mxu0
    %v3064 = vadd.f32 %v2998, %v3063
    %v3065 = vpop.f32.mrf.mxu0
    %v3066 = vpop.f32.mrf.mxu0
    %v3067 = vpop.f32.mrf.mxu0
    %3068 = vdwg.mxu0
    %vm3069 = vcmask 402432
    %3070 = vst.msk [vmem:[%s9] sm:$0x3] %vm3069, %v2984
    %3072 = vrot.lane.b32.xlu0 %v3064, 50
    %v3073 = vpop.permute.xlu0 %3072
    %vm3075 = vcmask 484752
    %3076 = vst.msk [vmem:[%s9] sm:$0x3] %vm3075, %v3073
    // Predicated region
    $region42: #{mnist_net_forward.1} parent=1 // pred_check
      _
    $region43: #{mnist_net_forward.1} parent=1 // pred_check_branch
      %3078 = sbr.rel (0) target = $region45
    $region44: #{mnist_net_forward.1} parent=1 // pred_region
      _
    $region45: #{mnist_net_forward.1} parent=1 // pred_fallthru
      _
    // Predicated region
    $region46: #{mnist_net_forward.1} parent=1 // pred_check
      _
    $region47: #{mnist_net_forward.1} parent=1 // pred_check_branch
      %3080 = sbr.rel (0) target = $region49
    $region48: #{mnist_net_forward.1} parent=1 // pred_region
      _
    $region49: #{mnist_net_forward.1} parent=1 // pred_fallthru
      _
    %3081 = vsyncpa [#allocation3], 1

</llo_original>
